<compile_context>
chip_gen: v7x
topology: tpu7x:2x2x1
jax: 0.10.0
libtpu: 0.0.40
codegen_flags: <defaults>
</compile_context>

<pallas_src>
import jax
import jax.numpy as jnp
from jax.experimental import pallas as pl
from jax.experimental.pallas import tpu as pltpu


def _round_up(a, b):
    return ((a + b - 1) // b) * b


# ----------------------------------------------------------------------------
# Pallas kernel: fused g1 = Wg*g+bg ; x1 = Wx*x+bx ; a = relu(g1+x1)
#                      psi = sigmoid(sum_f wp[f]*a_f + bp) ; out = x * psi
# ----------------------------------------------------------------------------
def attention_block_kernel(wg_ref, bgx_ref, wx_ref, wp_ref, bp_ref,
                           g_ref, x_ref, o_ref):
    # g_ref: (1, F_g, R, 128) VMEM    x_ref: (1, F_l, R, 128) VMEM
    # wg_ref: (F_g, F_int) SMEM       wx_ref: (F_l, F_int) SMEM
    # bgx_ref: (F_int,) SMEM (bg+bx)  wp_ref: (F_int,) SMEM   bp_ref: (1,) SMEM
    F_g = g_ref.shape[1]
    F_l = x_ref.shape[1]
    F_int = wg_ref.shape[1]

    g_blk = g_ref[0].astype(jnp.float32)      # (F_g, R, 128)
    x_blk = x_ref[0].astype(jnp.float32)      # (F_l, R, 128) -- reused for output

    psi = None
    for f in range(F_int):
        # g1_f + x1_f ; the two folded conv biases are pre-summed into bgx.
        acc = g_blk[0] * wg_ref[0, f] + bgx_ref[f]
        for c in range(1, F_g):
            acc = acc + g_blk[c] * wg_ref[c, f]
        for c in range(F_l):
            acc = acc + x_blk[c] * wx_ref[c, f]
        a = jnp.maximum(acc, 0.0)             # ReLU
        contrib = a * wp_ref[f]               # psi conv as a VPU reduction
        psi = contrib if psi is None else psi + contrib

    psi = jax.nn.sigmoid(psi + bp_ref[0])     # (R, 128)

    o_ref[0] = (x_blk * psi[None]).astype(o_ref.dtype)


def attention_block_pallas(g4, x4, wg, bgx, wx, wp, bp, *, rows_per_tile):
    """g4/x4: (N, C, rows, 128); weights/biases are tiny SMEM-resident arrays."""
    N, F_g, rows, lanes = g4.shape
    _, F_l, _, _ = x4.shape
    assert lanes == 128 and rows % rows_per_tile == 0
    R = rows_per_tile
    grid = (N, rows // R)

    smem = lambda: pl.BlockSpec(memory_space=pltpu.MemorySpace.SMEM)

    return pl.pallas_call(
        attention_block_kernel,
        out_shape=jax.ShapeDtypeStruct((N, F_l, rows, 128), x4.dtype),
        grid_spec=pltpu.PrefetchScalarGridSpec(
            num_scalar_prefetch=0,
            grid=grid,
            in_specs=[
                smem(),                                             # Wg (folded)
                smem(),                                             # bg+bx (folded)
                smem(),                                             # Wx (folded)
                smem(),                                             # Wpsi (folded)
                smem(),                                             # bpsi (folded)
                pl.BlockSpec((1, F_g, R, 128), lambda n, s: (n, 0, s, 0)),  # g tile
                pl.BlockSpec((1, F_l, R, 128), lambda n, s: (n, 0, s, 0)),  # x tile
            ],
            out_specs=pl.BlockSpec((1, F_l, R, 128), lambda n, s: (n, 0, s, 0)),
        ),
        compiler_params=pltpu.CompilerParams(
            dimension_semantics=("parallel", "parallel")),
    )(wg, bgx, wx, wp, bp, g4, x4)


# ----------------------------------------------------------------------------
# Parameter setup (deterministic) + BN folding glue
# ----------------------------------------------------------------------------
def fold_conv_bn(w, b, gamma, beta, mean, var, eps=1e-5):
    """Fold 1x1-conv (w: (Cout, Cin), b: (Cout,)) with BatchNorm (eval mode).

    Returns matmul-ready weight (Cin, Cout) and bias (Cout,).
    """
    scale = gamma / jnp.sqrt(var + eps)                 # (Cout,)
    w_eff = (w * scale[:, None]).T                      # (Cin, Cout)
    b_eff = (b - mean) * scale + beta                   # (Cout,)
    return w_eff.astype(jnp.float32), b_eff.astype(jnp.float32)


def make_params(key, F_g, F_l, F_int):
    ks = jax.random.split(key, 9)
    p = {}
    # conv weights (Cout, Cin) for 1x1 kernels, biases (Cout,)
    p["wg_conv"] = jax.random.normal(ks[0], (F_int, F_g), jnp.float32) * 0.2
    p["bg_conv"] = jax.random.normal(ks[1], (F_int,), jnp.float32) * 0.1
    p["wx_conv"] = jax.random.normal(ks[2], (F_int, F_l), jnp.float32) * 0.2
    p["bx_conv"] = jax.random.normal(ks[3], (F_int,), jnp.float32) * 0.1
    p["wp_conv"] = jax.random.normal(ks[4], (1, F_int), jnp.float32) * 0.2
    p["bp_conv"] = jax.random.normal(ks[5], (1,), jnp.float32) * 0.1
    # BatchNorm params (eval mode: gamma, beta, running_mean, running_var)
    p["bn_g"] = (jnp.ones((F_int,)) * 1.1, jnp.ones((F_int,)) * 0.05,
                 jnp.linspace(-0.1, 0.1, F_int), jnp.ones((F_int,)) * 0.9)
    p["bn_x"] = (jnp.ones((F_int,)) * 0.9, jnp.ones((F_int,)) * -0.05,
                 jnp.linspace(0.1, -0.1, F_int), jnp.ones((F_int,)) * 1.1)
    p["bn_p"] = (jnp.ones((1,)) * 1.05, jnp.ones((1,)) * 0.02,
                 jnp.ones((1,)) * 0.03, jnp.ones((1,)) * 0.95)
    return p


def attention_block_forward(g_nchw, x_nchw, params, *, lanes_per_tile=8192):
    N, F_g, H, W = g_nchw.shape
    _, F_l, _, _ = x_nchw.shape
    HW = H * W

    wg, bg = fold_conv_bn(params["wg_conv"], params["bg_conv"], *params["bn_g"])
    wx, bx = fold_conv_bn(params["wx_conv"], params["bx_conv"], *params["bn_x"])
    wp, bp = fold_conv_bn(params["wp_conv"], params["bp_conv"], *params["bn_p"])
    bgx = bg + bx                    # (F_int,)  biases of the two convs summed
    wp = wp.reshape(-1)              # (F_int,)
    bp = bp.reshape(-1)              # (1,)

    # Layout: NCHW kept; spatial viewed as (rows, 128) lanes.  Tail handled by
    # zero padding (zero x rows produce zero outputs and are sliced off).
    rows_total = pl.cdiv(HW, 128)
    r_target = max(8, (lanes_per_tile // 1024) * 8)   # rows per tile, mult of 8
    if rows_total <= r_target:
        R = rows_total
        rows_pad = rows_total
    else:
        R = r_target
        rows_pad = _round_up(rows_total, R)
    HW_pad = rows_pad * 128

    g3 = g_nchw.reshape(N, F_g, HW)
    x3 = x_nchw.reshape(N, F_l, HW)
    if HW_pad != HW:
        pad = ((0, 0), (0, 0), (0, HW_pad - HW))
        g3 = jnp.pad(g3, pad)
        x3 = jnp.pad(x3, pad)
    g4 = g3.reshape(N, F_g, rows_pad, 128)
    x4 = x3.reshape(N, F_l, rows_pad, 128)

    out4 = attention_block_pallas(g4, x4, wg, bgx, wx, wp, bp, rows_per_tile=R)
    out = out4.reshape(N, F_l, HW_pad)[:, :, :HW].reshape(N, F_l, H, W)
    return out


def attention_block_reference(g_nchw, x_nchw, params):
    """Pure-JAX reference (same math, NCHW) for correctness check."""
    hp = jax.lax.Precision.HIGHEST
    wg, bg = fold_conv_bn(params["wg_conv"], params["bg_conv"], *params["bn_g"])
    wx, bx = fold_conv_bn(params["wx_conv"], params["bx_conv"], *params["bn_x"])
    wp, bp = fold_conv_bn(params["wp_conv"], params["bp_conv"], *params["bn_p"])
    g1 = jnp.einsum("nchw,cf->nfhw", g_nchw, wg, precision=hp) + bg[None, :, None, None]
    x1 = jnp.einsum("nchw,cf->nfhw", x_nchw, wx, precision=hp) + bx[None, :, None, None]
    a = jnp.maximum(g1 + x1, 0.0)
    psi = jnp.einsum("nfhw,fo->nohw", a, wp, precision=hp) + bp[None, :, None, None]
    psi = jax.nn.sigmoid(psi)
    return x_nchw * psi


if __name__ == "__main__":
    # Small shapes consistent with the module: F_g = F_l = 4, F_int = 8.
    N, F_g, F_l, F_int, H, W = 2, 4, 4, 8, 16, 16

    key = jax.random.PRNGKey(0)
    kg, kx, kp = jax.random.split(key, 3)
    g = jax.random.normal(kg, (N, F_g, H, W), jnp.float32)
    x = jax.random.normal(kx, (N, F_l, H, W), jnp.float32)
    params = make_params(kp, F_g, F_l, F_int)

    out = attention_block_forward(g, x, params)
    out = jax.block_until_ready(out)
    ref = attention_block_reference(g, x, params)
    assert out.shape == (N, F_l, H, W)
    assert jnp.allclose(out, ref, atol=2e-5, rtol=2e-5), "mismatch vs reference"

    # Second check: non-multiple spatial size + multi-tile grid (exercises the
    # cdiv/padding path and a spatial grid axis > 1).
    H2 = W2 = 40   # H*W = 1600 -> 13 lane-rows, padded to 16, 2 tiles of 8
    g2 = jax.random.normal(jax.random.PRNGKey(1), (N, F_g, H2, W2), jnp.float32)
    x2 = jax.random.normal(jax.random.PRNGKey(2), (N, F_l, H2, W2), jnp.float32)
    out2 = jax.block_until_ready(
        attention_block_forward(g2, x2, params, lanes_per_tile=1024))
    ref2 = attention_block_reference(g2, x2, params)
    assert out2.shape == (N, F_l, H2, W2)
    assert jnp.allclose(out2, ref2, atol=2e-5, rtol=2e-5), "mismatch (padded case)"

    print("KERNEL_OK")
</pallas_src>

<mosaic_0001>
module attributes {stable_mosaic.version = 11 : i64} {
  func.func @attention_block_kernel(%arg0: i32, %arg1: i32, %arg2: memref<4x8xf32, #tpu.memory_space<smem>>, %arg3: memref<8xf32, #tpu.memory_space<smem>>, %arg4: memref<4x8xf32, #tpu.memory_space<smem>>, %arg5: memref<8xf32, #tpu.memory_space<smem>>, %arg6: memref<1xf32, #tpu.memory_space<smem>>, %arg7: memref<1x4x2x128xf32, #tpu.memory_space<vmem>>, %arg8: memref<1x4x2x128xf32, #tpu.memory_space<vmem>>, %arg9: memref<1x4x2x128xf32, #tpu.memory_space<vmem>>) attributes {dimension_semantics = [#tpu.dimension_semantics<parallel>, #tpu.dimension_semantics<parallel>], iteration_bounds = array<i64: 2, 1>, scalar_prefetch = 0 : i64, scratch_operands = 0 : i64, tpu.core_type = #tpu.core_type<tc>, window_params = [{transform_indices = @transform_0, window_bounds = array<i64: 4, 8>}, {transform_indices = @transform_1, window_bounds = array<i64: 8>}, {transform_indices = @transform_2, window_bounds = array<i64: 4, 8>}, {transform_indices = @transform_3, window_bounds = array<i64: 8>}, {transform_indices = @transform_4, window_bounds = array<i64: 1>}, {transform_indices = @transform_5, window_bounds = array<i64: 1, 4, 2, 128>}, {transform_indices = @transform_6, window_bounds = array<i64: 1, 4, 2, 128>}, {transform_indices = @transform_7, window_bounds = array<i64: 1, 4, 2, 128>}]} {
    %c0 = arith.constant 0 : index
    %c0_0 = arith.constant 0 : index
    %c0_1 = arith.constant 0 : index
    %c0_2 = arith.constant 0 : index
    %0 = vector.load %arg7[%c0, %c0_0, %c0_1, %c0_2] : memref<1x4x2x128xf32, #tpu.memory_space<vmem>>, vector<1x4x2x128xf32>
    %1 = vector.shape_cast %0 : vector<1x4x2x128xf32> to vector<4x2x128xf32>
    %c0_3 = arith.constant 0 : index
    %c0_4 = arith.constant 0 : index
    %c0_5 = arith.constant 0 : index
    %c0_6 = arith.constant 0 : index
    %2 = vector.load %arg8[%c0_3, %c0_4, %c0_5, %c0_6] : memref<1x4x2x128xf32, #tpu.memory_space<vmem>>, vector<1x4x2x128xf32>
    %3 = vector.shape_cast %2 : vector<1x4x2x128xf32> to vector<4x2x128xf32>
    %4 = vector.extract_strided_slice %1 {offsets = [0, 0, 0], sizes = [1, 2, 128], strides = [1, 1, 1]} : vector<4x2x128xf32> to vector<1x2x128xf32>
    %5 = vector.shape_cast %4 : vector<1x2x128xf32> to vector<2x128xf32>
    %c0_7 = arith.constant 0 : index
    %c0_8 = arith.constant 0 : index
    %6 = memref.load %arg2[%c0_7, %c0_8] : memref<4x8xf32, #tpu.memory_space<smem>>
    %7 = vector.broadcast %6 : f32 to vector<2x128xf32>
    %8 = arith.mulf %5, %7 : vector<2x128xf32>
    %c0_9 = arith.constant 0 : index
    %9 = memref.load %arg3[%c0_9] : memref<8xf32, #tpu.memory_space<smem>>
    %10 = vector.broadcast %9 : f32 to vector<2x128xf32>
    %11 = arith.addf %8, %10 : vector<2x128xf32>
    %12 = vector.extract_strided_slice %1 {offsets = [1, 0, 0], sizes = [1, 2, 128], strides = [1, 1, 1]} : vector<4x2x128xf32> to vector<1x2x128xf32>
    %13 = vector.shape_cast %12 : vector<1x2x128xf32> to vector<2x128xf32>
    %c1 = arith.constant 1 : index
    %c0_10 = arith.constant 0 : index
    %14 = memref.load %arg2[%c1, %c0_10] : memref<4x8xf32, #tpu.memory_space<smem>>
    %15 = vector.broadcast %14 : f32 to vector<2x128xf32>
    %16 = arith.mulf %13, %15 : vector<2x128xf32>
    %17 = arith.addf %11, %16 : vector<2x128xf32>
    %18 = vector.extract_strided_slice %1 {offsets = [2, 0, 0], sizes = [1, 2, 128], strides = [1, 1, 1]} : vector<4x2x128xf32> to vector<1x2x128xf32>
    %19 = vector.shape_cast %18 : vector<1x2x128xf32> to vector<2x128xf32>
    %c2 = arith.constant 2 : index
    %c0_11 = arith.constant 0 : index
    %20 = memref.load %arg2[%c2, %c0_11] : memref<4x8xf32, #tpu.memory_space<smem>>
    %21 = vector.broadcast %20 : f32 to vector<2x128xf32>
    %22 = arith.mulf %19, %21 : vector<2x128xf32>
    %23 = arith.addf %17, %22 : vector<2x128xf32>
    %24 = vector.extract_strided_slice %1 {offsets = [3, 0, 0], sizes = [1, 2, 128], strides = [1, 1, 1]} : vector<4x2x128xf32> to vector<1x2x128xf32>
    %25 = vector.shape_cast %24 : vector<1x2x128xf32> to vector<2x128xf32>
    %c3 = arith.constant 3 : index
    %c0_12 = arith.constant 0 : index
    %26 = memref.load %arg2[%c3, %c0_12] : memref<4x8xf32, #tpu.memory_space<smem>>
    %27 = vector.broadcast %26 : f32 to vector<2x128xf32>
    %28 = arith.mulf %25, %27 : vector<2x128xf32>
    %29 = arith.addf %23, %28 : vector<2x128xf32>
    %30 = vector.extract_strided_slice %3 {offsets = [0, 0, 0], sizes = [1, 2, 128], strides = [1, 1, 1]} : vector<4x2x128xf32> to vector<1x2x128xf32>
    %31 = vector.shape_cast %30 : vector<1x2x128xf32> to vector<2x128xf32>
    %c0_13 = arith.constant 0 : index
    %c0_14 = arith.constant 0 : index
    %32 = memref.load %arg4[%c0_13, %c0_14] : memref<4x8xf32, #tpu.memory_space<smem>>
    %33 = vector.broadcast %32 : f32 to vector<2x128xf32>
    %34 = arith.mulf %31, %33 : vector<2x128xf32>
    %35 = arith.addf %29, %34 : vector<2x128xf32>
    %36 = vector.extract_strided_slice %3 {offsets = [1, 0, 0], sizes = [1, 2, 128], strides = [1, 1, 1]} : vector<4x2x128xf32> to vector<1x2x128xf32>
    %37 = vector.shape_cast %36 : vector<1x2x128xf32> to vector<2x128xf32>
    %c1_15 = arith.constant 1 : index
    %c0_16 = arith.constant 0 : index
    %38 = memref.load %arg4[%c1_15, %c0_16] : memref<4x8xf32, #tpu.memory_space<smem>>
    %39 = vector.broadcast %38 : f32 to vector<2x128xf32>
    %40 = arith.mulf %37, %39 : vector<2x128xf32>
    %41 = arith.addf %35, %40 : vector<2x128xf32>
    %42 = vector.extract_strided_slice %3 {offsets = [2, 0, 0], sizes = [1, 2, 128], strides = [1, 1, 1]} : vector<4x2x128xf32> to vector<1x2x128xf32>
    %43 = vector.shape_cast %42 : vector<1x2x128xf32> to vector<2x128xf32>
    %c2_17 = arith.constant 2 : index
    %c0_18 = arith.constant 0 : index
    %44 = memref.load %arg4[%c2_17, %c0_18] : memref<4x8xf32, #tpu.memory_space<smem>>
    %45 = vector.broadcast %44 : f32 to vector<2x128xf32>
    %46 = arith.mulf %43, %45 : vector<2x128xf32>
    %47 = arith.addf %41, %46 : vector<2x128xf32>
    %48 = vector.extract_strided_slice %3 {offsets = [3, 0, 0], sizes = [1, 2, 128], strides = [1, 1, 1]} : vector<4x2x128xf32> to vector<1x2x128xf32>
    %49 = vector.shape_cast %48 : vector<1x2x128xf32> to vector<2x128xf32>
    %c3_19 = arith.constant 3 : index
    %c0_20 = arith.constant 0 : index
    %50 = memref.load %arg4[%c3_19, %c0_20] : memref<4x8xf32, #tpu.memory_space<smem>>
    %51 = vector.broadcast %50 : f32 to vector<2x128xf32>
    %52 = arith.mulf %49, %51 : vector<2x128xf32>
    %53 = arith.addf %47, %52 : vector<2x128xf32>
    %cst = arith.constant 0.000000e+00 : f32
    %54 = vector.broadcast %cst : f32 to vector<2x128xf32>
    %55 = arith.maximumf %53, %54 : vector<2x128xf32>
    %c0_21 = arith.constant 0 : index
    %56 = memref.load %arg5[%c0_21] : memref<8xf32, #tpu.memory_space<smem>>
    %57 = vector.broadcast %56 : f32 to vector<2x128xf32>
    %58 = arith.mulf %55, %57 : vector<2x128xf32>
    %59 = vector.extract_strided_slice %1 {offsets = [0, 0, 0], sizes = [1, 2, 128], strides = [1, 1, 1]} : vector<4x2x128xf32> to vector<1x2x128xf32>
    %60 = vector.shape_cast %59 : vector<1x2x128xf32> to vector<2x128xf32>
    %c0_22 = arith.constant 0 : index
    %c1_23 = arith.constant 1 : index
    %61 = memref.load %arg2[%c0_22, %c1_23] : memref<4x8xf32, #tpu.memory_space<smem>>
    %62 = vector.broadcast %61 : f32 to vector<2x128xf32>
    %63 = arith.mulf %60, %62 : vector<2x128xf32>
    %c1_24 = arith.constant 1 : index
    %64 = memref.load %arg3[%c1_24] : memref<8xf32, #tpu.memory_space<smem>>
    %65 = vector.broadcast %64 : f32 to vector<2x128xf32>
    %66 = arith.addf %63, %65 : vector<2x128xf32>
    %67 = vector.extract_strided_slice %1 {offsets = [1, 0, 0], sizes = [1, 2, 128], strides = [1, 1, 1]} : vector<4x2x128xf32> to vector<1x2x128xf32>
    %68 = vector.shape_cast %67 : vector<1x2x128xf32> to vector<2x128xf32>
    %c1_25 = arith.constant 1 : index
    %c1_26 = arith.constant 1 : index
    %69 = memref.load %arg2[%c1_25, %c1_26] : memref<4x8xf32, #tpu.memory_space<smem>>
    %70 = vector.broadcast %69 : f32 to vector<2x128xf32>
    %71 = arith.mulf %68, %70 : vector<2x128xf32>
    %72 = arith.addf %66, %71 : vector<2x128xf32>
    %73 = vector.extract_strided_slice %1 {offsets = [2, 0, 0], sizes = [1, 2, 128], strides = [1, 1, 1]} : vector<4x2x128xf32> to vector<1x2x128xf32>
    %74 = vector.shape_cast %73 : vector<1x2x128xf32> to vector<2x128xf32>
    %c2_27 = arith.constant 2 : index
    %c1_28 = arith.constant 1 : index
    %75 = memref.load %arg2[%c2_27, %c1_28] : memref<4x8xf32, #tpu.memory_space<smem>>
    %76 = vector.broadcast %75 : f32 to vector<2x128xf32>
    %77 = arith.mulf %74, %76 : vector<2x128xf32>
    %78 = arith.addf %72, %77 : vector<2x128xf32>
    %79 = vector.extract_strided_slice %1 {offsets = [3, 0, 0], sizes = [1, 2, 128], strides = [1, 1, 1]} : vector<4x2x128xf32> to vector<1x2x128xf32>
    %80 = vector.shape_cast %79 : vector<1x2x128xf32> to vector<2x128xf32>
    %c3_29 = arith.constant 3 : index
    %c1_30 = arith.constant 1 : index
    %81 = memref.load %arg2[%c3_29, %c1_30] : memref<4x8xf32, #tpu.memory_space<smem>>
    %82 = vector.broadcast %81 : f32 to vector<2x128xf32>
    %83 = arith.mulf %80, %82 : vector<2x128xf32>
    %84 = arith.addf %78, %83 : vector<2x128xf32>
    %85 = vector.extract_strided_slice %3 {offsets = [0, 0, 0], sizes = [1, 2, 128], strides = [1, 1, 1]} : vector<4x2x128xf32> to vector<1x2x128xf32>
    %86 = vector.shape_cast %85 : vector<1x2x128xf32> to vector<2x128xf32>
    %c0_31 = arith.constant 0 : index
    %c1_32 = arith.constant 1 : index
    %87 = memref.load %arg4[%c0_31, %c1_32] : memref<4x8xf32, #tpu.memory_space<smem>>
    %88 = vector.broadcast %87 : f32 to vector<2x128xf32>
    %89 = arith.mulf %86, %88 : vector<2x128xf32>
    %90 = arith.addf %84, %89 : vector<2x128xf32>
    %91 = vector.extract_strided_slice %3 {offsets = [1, 0, 0], sizes = [1, 2, 128], strides = [1, 1, 1]} : vector<4x2x128xf32> to vector<1x2x128xf32>
    %92 = vector.shape_cast %91 : vector<1x2x128xf32> to vector<2x128xf32>
    %c1_33 = arith.constant 1 : index
    %c1_34 = arith.constant 1 : index
    %93 = memref.load %arg4[%c1_33, %c1_34] : memref<4x8xf32, #tpu.memory_space<smem>>
    %94 = vector.broadcast %93 : f32 to vector<2x128xf32>
    %95 = arith.mulf %92, %94 : vector<2x128xf32>
    %96 = arith.addf %90, %95 : vector<2x128xf32>
    %97 = vector.extract_strided_slice %3 {offsets = [2, 0, 0], sizes = [1, 2, 128], strides = [1, 1, 1]} : vector<4x2x128xf32> to vector<1x2x128xf32>
    %98 = vector.shape_cast %97 : vector<1x2x128xf32> to vector<2x128xf32>
    %c2_35 = arith.constant 2 : index
    %c1_36 = arith.constant 1 : index
    %99 = memref.load %arg4[%c2_35, %c1_36] : memref<4x8xf32, #tpu.memory_space<smem>>
    %100 = vector.broadcast %99 : f32 to vector<2x128xf32>
    %101 = arith.mulf %98, %100 : vector<2x128xf32>
    %102 = arith.addf %96, %101 : vector<2x128xf32>
    %103 = vector.extract_strided_slice %3 {offsets = [3, 0, 0], sizes = [1, 2, 128], strides = [1, 1, 1]} : vector<4x2x128xf32> to vector<1x2x128xf32>
    %104 = vector.shape_cast %103 : vector<1x2x128xf32> to vector<2x128xf32>
    %c3_37 = arith.constant 3 : index
    %c1_38 = arith.constant 1 : index
    %105 = memref.load %arg4[%c3_37, %c1_38] : memref<4x8xf32, #tpu.memory_space<smem>>
    %106 = vector.broadcast %105 : f32 to vector<2x128xf32>
    %107 = arith.mulf %104, %106 : vector<2x128xf32>
    %108 = arith.addf %102, %107 : vector<2x128xf32>
    %cst_39 = arith.constant 0.000000e+00 : f32
    %109 = vector.broadcast %cst_39 : f32 to vector<2x128xf32>
    %110 = arith.maximumf %108, %109 : vector<2x128xf32>
    %c1_40 = arith.constant 1 : index
    %111 = memref.load %arg5[%c1_40] : memref<8xf32, #tpu.memory_space<smem>>
    %112 = vector.broadcast %111 : f32 to vector<2x128xf32>
    %113 = arith.mulf %110, %112 : vector<2x128xf32>
    %114 = arith.addf %58, %113 : vector<2x128xf32>
    %115 = vector.extract_strided_slice %1 {offsets = [0, 0, 0], sizes = [1, 2, 128], strides = [1, 1, 1]} : vector<4x2x128xf32> to vector<1x2x128xf32>
    %116 = vector.shape_cast %115 : vector<1x2x128xf32> to vector<2x128xf32>
    %c0_41 = arith.constant 0 : index
    %c2_42 = arith.constant 2 : index
    %117 = memref.load %arg2[%c0_41, %c2_42] : memref<4x8xf32, #tpu.memory_space<smem>>
    %118 = vector.broadcast %117 : f32 to vector<2x128xf32>
    %119 = arith.mulf %116, %118 : vector<2x128xf32>
    %c2_43 = arith.constant 2 : index
    %120 = memref.load %arg3[%c2_43] : memref<8xf32, #tpu.memory_space<smem>>
    %121 = vector.broadcast %120 : f32 to vector<2x128xf32>
    %122 = arith.addf %119, %121 : vector<2x128xf32>
    %123 = vector.extract_strided_slice %1 {offsets = [1, 0, 0], sizes = [1, 2, 128], strides = [1, 1, 1]} : vector<4x2x128xf32> to vector<1x2x128xf32>
    %124 = vector.shape_cast %123 : vector<1x2x128xf32> to vector<2x128xf32>
    %c1_44 = arith.constant 1 : index
    %c2_45 = arith.constant 2 : index
    %125 = memref.load %arg2[%c1_44, %c2_45] : memref<4x8xf32, #tpu.memory_space<smem>>
    %126 = vector.broadcast %125 : f32 to vector<2x128xf32>
    %127 = arith.mulf %124, %126 : vector<2x128xf32>
    %128 = arith.addf %122, %127 : vector<2x128xf32>
    %129 = vector.extract_strided_slice %1 {offsets = [2, 0, 0], sizes = [1, 2, 128], strides = [1, 1, 1]} : vector<4x2x128xf32> to vector<1x2x128xf32>
    %130 = vector.shape_cast %129 : vector<1x2x128xf32> to vector<2x128xf32>
    %c2_46 = arith.constant 2 : index
    %c2_47 = arith.constant 2 : index
    %131 = memref.load %arg2[%c2_46, %c2_47] : memref<4x8xf32, #tpu.memory_space<smem>>
    %132 = vector.broadcast %131 : f32 to vector<2x128xf32>
    %133 = arith.mulf %130, %132 : vector<2x128xf32>
    %134 = arith.addf %128, %133 : vector<2x128xf32>
    %135 = vector.extract_strided_slice %1 {offsets = [3, 0, 0], sizes = [1, 2, 128], strides = [1, 1, 1]} : vector<4x2x128xf32> to vector<1x2x128xf32>
    %136 = vector.shape_cast %135 : vector<1x2x128xf32> to vector<2x128xf32>
    %c3_48 = arith.constant 3 : index
    %c2_49 = arith.constant 2 : index
    %137 = memref.load %arg2[%c3_48, %c2_49] : memref<4x8xf32, #tpu.memory_space<smem>>
    %138 = vector.broadcast %137 : f32 to vector<2x128xf32>
    %139 = arith.mulf %136, %138 : vector<2x128xf32>
    %140 = arith.addf %134, %139 : vector<2x128xf32>
    %141 = vector.extract_strided_slice %3 {offsets = [0, 0, 0], sizes = [1, 2, 128], strides = [1, 1, 1]} : vector<4x2x128xf32> to vector<1x2x128xf32>
    %142 = vector.shape_cast %141 : vector<1x2x128xf32> to vector<2x128xf32>
    %c0_50 = arith.constant 0 : index
    %c2_51 = arith.constant 2 : index
    %143 = memref.load %arg4[%c0_50, %c2_51] : memref<4x8xf32, #tpu.memory_space<smem>>
    %144 = vector.broadcast %143 : f32 to vector<2x128xf32>
    %145 = arith.mulf %142, %144 : vector<2x128xf32>
    %146 = arith.addf %140, %145 : vector<2x128xf32>
    %147 = vector.extract_strided_slice %3 {offsets = [1, 0, 0], sizes = [1, 2, 128], strides = [1, 1, 1]} : vector<4x2x128xf32> to vector<1x2x128xf32>
    %148 = vector.shape_cast %147 : vector<1x2x128xf32> to vector<2x128xf32>
    %c1_52 = arith.constant 1 : index
    %c2_53 = arith.constant 2 : index
    %149 = memref.load %arg4[%c1_52, %c2_53] : memref<4x8xf32, #tpu.memory_space<smem>>
    %150 = vector.broadcast %149 : f32 to vector<2x128xf32>
    %151 = arith.mulf %148, %150 : vector<2x128xf32>
    %152 = arith.addf %146, %151 : vector<2x128xf32>
    %153 = vector.extract_strided_slice %3 {offsets = [2, 0, 0], sizes = [1, 2, 128], strides = [1, 1, 1]} : vector<4x2x128xf32> to vector<1x2x128xf32>
    %154 = vector.shape_cast %153 : vector<1x2x128xf32> to vector<2x128xf32>
    %c2_54 = arith.constant 2 : index
    %c2_55 = arith.constant 2 : index
    %155 = memref.load %arg4[%c2_54, %c2_55] : memref<4x8xf32, #tpu.memory_space<smem>>
    %156 = vector.broadcast %155 : f32 to vector<2x128xf32>
    %157 = arith.mulf %154, %156 : vector<2x128xf32>
    %158 = arith.addf %152, %157 : vector<2x128xf32>
    %159 = vector.extract_strided_slice %3 {offsets = [3, 0, 0], sizes = [1, 2, 128], strides = [1, 1, 1]} : vector<4x2x128xf32> to vector<1x2x128xf32>
    %160 = vector.shape_cast %159 : vector<1x2x128xf32> to vector<2x128xf32>
    %c3_56 = arith.constant 3 : index
    %c2_57 = arith.constant 2 : index
    %161 = memref.load %arg4[%c3_56, %c2_57] : memref<4x8xf32, #tpu.memory_space<smem>>
    %162 = vector.broadcast %161 : f32 to vector<2x128xf32>
    %163 = arith.mulf %160, %162 : vector<2x128xf32>
    %164 = arith.addf %158, %163 : vector<2x128xf32>
    %cst_58 = arith.constant 0.000000e+00 : f32
    %165 = vector.broadcast %cst_58 : f32 to vector<2x128xf32>
    %166 = arith.maximumf %164, %165 : vector<2x128xf32>
    %c2_59 = arith.constant 2 : index
    %167 = memref.load %arg5[%c2_59] : memref<8xf32, #tpu.memory_space<smem>>
    %168 = vector.broadcast %167 : f32 to vector<2x128xf32>
    %169 = arith.mulf %166, %168 : vector<2x128xf32>
    %170 = arith.addf %114, %169 : vector<2x128xf32>
    %171 = vector.extract_strided_slice %1 {offsets = [0, 0, 0], sizes = [1, 2, 128], strides = [1, 1, 1]} : vector<4x2x128xf32> to vector<1x2x128xf32>
    %172 = vector.shape_cast %171 : vector<1x2x128xf32> to vector<2x128xf32>
    %c0_60 = arith.constant 0 : index
    %c3_61 = arith.constant 3 : index
    %173 = memref.load %arg2[%c0_60, %c3_61] : memref<4x8xf32, #tpu.memory_space<smem>>
    %174 = vector.broadcast %173 : f32 to vector<2x128xf32>
    %175 = arith.mulf %172, %174 : vector<2x128xf32>
    %c3_62 = arith.constant 3 : index
    %176 = memref.load %arg3[%c3_62] : memref<8xf32, #tpu.memory_space<smem>>
    %177 = vector.broadcast %176 : f32 to vector<2x128xf32>
    %178 = arith.addf %175, %177 : vector<2x128xf32>
    %179 = vector.extract_strided_slice %1 {offsets = [1, 0, 0], sizes = [1, 2, 128], strides = [1, 1, 1]} : vector<4x2x128xf32> to vector<1x2x128xf32>
    %180 = vector.shape_cast %179 : vector<1x2x128xf32> to vector<2x128xf32>
    %c1_63 = arith.constant 1 : index
    %c3_64 = arith.constant 3 : index
    %181 = memref.load %arg2[%c1_63, %c3_64] : memref<4x8xf32, #tpu.memory_space<smem>>
    %182 = vector.broadcast %181 : f32 to vector<2x128xf32>
    %183 = arith.mulf %180, %182 : vector<2x128xf32>
    %184 = arith.addf %178, %183 : vector<2x128xf32>
    %185 = vector.extract_strided_slice %1 {offsets = [2, 0, 0], sizes = [1, 2, 128], strides = [1, 1, 1]} : vector<4x2x128xf32> to vector<1x2x128xf32>
    %186 = vector.shape_cast %185 : vector<1x2x128xf32> to vector<2x128xf32>
    %c2_65 = arith.constant 2 : index
    %c3_66 = arith.constant 3 : index
    %187 = memref.load %arg2[%c2_65, %c3_66] : memref<4x8xf32, #tpu.memory_space<smem>>
    %188 = vector.broadcast %187 : f32 to vector<2x128xf32>
    %189 = arith.mulf %186, %188 : vector<2x128xf32>
    %190 = arith.addf %184, %189 : vector<2x128xf32>
    %191 = vector.extract_strided_slice %1 {offsets = [3, 0, 0], sizes = [1, 2, 128], strides = [1, 1, 1]} : vector<4x2x128xf32> to vector<1x2x128xf32>
    %192 = vector.shape_cast %191 : vector<1x2x128xf32> to vector<2x128xf32>
    %c3_67 = arith.constant 3 : index
    %c3_68 = arith.constant 3 : index
    %193 = memref.load %arg2[%c3_67, %c3_68] : memref<4x8xf32, #tpu.memory_space<smem>>
    %194 = vector.broadcast %193 : f32 to vector<2x128xf32>
    %195 = arith.mulf %192, %194 : vector<2x128xf32>
    %196 = arith.addf %190, %195 : vector<2x128xf32>
    %197 = vector.extract_strided_slice %3 {offsets = [0, 0, 0], sizes = [1, 2, 128], strides = [1, 1, 1]} : vector<4x2x128xf32> to vector<1x2x128xf32>
    %198 = vector.shape_cast %197 : vector<1x2x128xf32> to vector<2x128xf32>
    %c0_69 = arith.constant 0 : index
    %c3_70 = arith.constant 3 : index
    %199 = memref.load %arg4[%c0_69, %c3_70] : memref<4x8xf32, #tpu.memory_space<smem>>
    %200 = vector.broadcast %199 : f32 to vector<2x128xf32>
    %201 = arith.mulf %198, %200 : vector<2x128xf32>
    %202 = arith.addf %196, %201 : vector<2x128xf32>
    %203 = vector.extract_strided_slice %3 {offsets = [1, 0, 0], sizes = [1, 2, 128], strides = [1, 1, 1]} : vector<4x2x128xf32> to vector<1x2x128xf32>
    %204 = vector.shape_cast %203 : vector<1x2x128xf32> to vector<2x128xf32>
    %c1_71 = arith.constant 1 : index
    %c3_72 = arith.constant 3 : index
    %205 = memref.load %arg4[%c1_71, %c3_72] : memref<4x8xf32, #tpu.memory_space<smem>>
    %206 = vector.broadcast %205 : f32 to vector<2x128xf32>
    %207 = arith.mulf %204, %206 : vector<2x128xf32>
    %208 = arith.addf %202, %207 : vector<2x128xf32>
    %209 = vector.extract_strided_slice %3 {offsets = [2, 0, 0], sizes = [1, 2, 128], strides = [1, 1, 1]} : vector<4x2x128xf32> to vector<1x2x128xf32>
    %210 = vector.shape_cast %209 : vector<1x2x128xf32> to vector<2x128xf32>
    %c2_73 = arith.constant 2 : index
    %c3_74 = arith.constant 3 : index
    %211 = memref.load %arg4[%c2_73, %c3_74] : memref<4x8xf32, #tpu.memory_space<smem>>
    %212 = vector.broadcast %211 : f32 to vector<2x128xf32>
    %213 = arith.mulf %210, %212 : vector<2x128xf32>
    %214 = arith.addf %208, %213 : vector<2x128xf32>
    %215 = vector.extract_strided_slice %3 {offsets = [3, 0, 0], sizes = [1, 2, 128], strides = [1, 1, 1]} : vector<4x2x128xf32> to vector<1x2x128xf32>
    %216 = vector.shape_cast %215 : vector<1x2x128xf32> to vector<2x128xf32>
    %c3_75 = arith.constant 3 : index
    %c3_76 = arith.constant 3 : index
    %217 = memref.load %arg4[%c3_75, %c3_76] : memref<4x8xf32, #tpu.memory_space<smem>>
    %218 = vector.broadcast %217 : f32 to vector<2x128xf32>
    %219 = arith.mulf %216, %218 : vector<2x128xf32>
    %220 = arith.addf %214, %219 : vector<2x128xf32>
    %cst_77 = arith.constant 0.000000e+00 : f32
    %221 = vector.broadcast %cst_77 : f32 to vector<2x128xf32>
    %222 = arith.maximumf %220, %221 : vector<2x128xf32>
    %c3_78 = arith.constant 3 : index
    %223 = memref.load %arg5[%c3_78] : memref<8xf32, #tpu.memory_space<smem>>
    %224 = vector.broadcast %223 : f32 to vector<2x128xf32>
    %225 = arith.mulf %222, %224 : vector<2x128xf32>
    %226 = arith.addf %170, %225 : vector<2x128xf32>
    %227 = vector.extract_strided_slice %1 {offsets = [0, 0, 0], sizes = [1, 2, 128], strides = [1, 1, 1]} : vector<4x2x128xf32> to vector<1x2x128xf32>
    %228 = vector.shape_cast %227 : vector<1x2x128xf32> to vector<2x128xf32>
    %c0_79 = arith.constant 0 : index
    %c4 = arith.constant 4 : index
    %229 = memref.load %arg2[%c0_79, %c4] : memref<4x8xf32, #tpu.memory_space<smem>>
    %230 = vector.broadcast %229 : f32 to vector<2x128xf32>
    %231 = arith.mulf %228, %230 : vector<2x128xf32>
    %c4_80 = arith.constant 4 : index
    %232 = memref.load %arg3[%c4_80] : memref<8xf32, #tpu.memory_space<smem>>
    %233 = vector.broadcast %232 : f32 to vector<2x128xf32>
    %234 = arith.addf %231, %233 : vector<2x128xf32>
    %235 = vector.extract_strided_slice %1 {offsets = [1, 0, 0], sizes = [1, 2, 128], strides = [1, 1, 1]} : vector<4x2x128xf32> to vector<1x2x128xf32>
    %236 = vector.shape_cast %235 : vector<1x2x128xf32> to vector<2x128xf32>
    %c1_81 = arith.constant 1 : index
    %c4_82 = arith.constant 4 : index
    %237 = memref.load %arg2[%c1_81, %c4_82] : memref<4x8xf32, #tpu.memory_space<smem>>
    %238 = vector.broadcast %237 : f32 to vector<2x128xf32>
    %239 = arith.mulf %236, %238 : vector<2x128xf32>
    %240 = arith.addf %234, %239 : vector<2x128xf32>
    %241 = vector.extract_strided_slice %1 {offsets = [2, 0, 0], sizes = [1, 2, 128], strides = [1, 1, 1]} : vector<4x2x128xf32> to vector<1x2x128xf32>
    %242 = vector.shape_cast %241 : vector<1x2x128xf32> to vector<2x128xf32>
    %c2_83 = arith.constant 2 : index
    %c4_84 = arith.constant 4 : index
    %243 = memref.load %arg2[%c2_83, %c4_84] : memref<4x8xf32, #tpu.memory_space<smem>>
    %244 = vector.broadcast %243 : f32 to vector<2x128xf32>
    %245 = arith.mulf %242, %244 : vector<2x128xf32>
    %246 = arith.addf %240, %245 : vector<2x128xf32>
    %247 = vector.extract_strided_slice %1 {offsets = [3, 0, 0], sizes = [1, 2, 128], strides = [1, 1, 1]} : vector<4x2x128xf32> to vector<1x2x128xf32>
    %248 = vector.shape_cast %247 : vector<1x2x128xf32> to vector<2x128xf32>
    %c3_85 = arith.constant 3 : index
    %c4_86 = arith.constant 4 : index
    %249 = memref.load %arg2[%c3_85, %c4_86] : memref<4x8xf32, #tpu.memory_space<smem>>
    %250 = vector.broadcast %249 : f32 to vector<2x128xf32>
    %251 = arith.mulf %248, %250 : vector<2x128xf32>
    %252 = arith.addf %246, %251 : vector<2x128xf32>
    %253 = vector.extract_strided_slice %3 {offsets = [0, 0, 0], sizes = [1, 2, 128], strides = [1, 1, 1]} : vector<4x2x128xf32> to vector<1x2x128xf32>
    %254 = vector.shape_cast %253 : vector<1x2x128xf32> to vector<2x128xf32>
    %c0_87 = arith.constant 0 : index
    %c4_88 = arith.constant 4 : index
    %255 = memref.load %arg4[%c0_87, %c4_88] : memref<4x8xf32, #tpu.memory_space<smem>>
    %256 = vector.broadcast %255 : f32 to vector<2x128xf32>
    %257 = arith.mulf %254, %256 : vector<2x128xf32>
    %258 = arith.addf %252, %257 : vector<2x128xf32>
    %259 = vector.extract_strided_slice %3 {offsets = [1, 0, 0], sizes = [1, 2, 128], strides = [1, 1, 1]} : vector<4x2x128xf32> to vector<1x2x128xf32>
    %260 = vector.shape_cast %259 : vector<1x2x128xf32> to vector<2x128xf32>
    %c1_89 = arith.constant 1 : index
    %c4_90 = arith.constant 4 : index
    %261 = memref.load %arg4[%c1_89, %c4_90] : memref<4x8xf32, #tpu.memory_space<smem>>
    %262 = vector.broadcast %261 : f32 to vector<2x128xf32>
    %263 = arith.mulf %260, %262 : vector<2x128xf32>
    %264 = arith.addf %258, %263 : vector<2x128xf32>
    %265 = vector.extract_strided_slice %3 {offsets = [2, 0, 0], sizes = [1, 2, 128], strides = [1, 1, 1]} : vector<4x2x128xf32> to vector<1x2x128xf32>
    %266 = vector.shape_cast %265 : vector<1x2x128xf32> to vector<2x128xf32>
    %c2_91 = arith.constant 2 : index
    %c4_92 = arith.constant 4 : index
    %267 = memref.load %arg4[%c2_91, %c4_92] : memref<4x8xf32, #tpu.memory_space<smem>>
    %268 = vector.broadcast %267 : f32 to vector<2x128xf32>
    %269 = arith.mulf %266, %268 : vector<2x128xf32>
    %270 = arith.addf %264, %269 : vector<2x128xf32>
    %271 = vector.extract_strided_slice %3 {offsets = [3, 0, 0], sizes = [1, 2, 128], strides = [1, 1, 1]} : vector<4x2x128xf32> to vector<1x2x128xf32>
    %272 = vector.shape_cast %271 : vector<1x2x128xf32> to vector<2x128xf32>
    %c3_93 = arith.constant 3 : index
    %c4_94 = arith.constant 4 : index
    %273 = memref.load %arg4[%c3_93, %c4_94] : memref<4x8xf32, #tpu.memory_space<smem>>
    %274 = vector.broadcast %273 : f32 to vector<2x128xf32>
    %275 = arith.mulf %272, %274 : vector<2x128xf32>
    %276 = arith.addf %270, %275 : vector<2x128xf32>
    %cst_95 = arith.constant 0.000000e+00 : f32
    %277 = vector.broadcast %cst_95 : f32 to vector<2x128xf32>
    %278 = arith.maximumf %276, %277 : vector<2x128xf32>
    %c4_96 = arith.constant 4 : index
    %279 = memref.load %arg5[%c4_96] : memref<8xf32, #tpu.memory_space<smem>>
    %280 = vector.broadcast %279 : f32 to vector<2x128xf32>
    %281 = arith.mulf %278, %280 : vector<2x128xf32>
    %282 = arith.addf %226, %281 : vector<2x128xf32>
    %283 = vector.extract_strided_slice %1 {offsets = [0, 0, 0], sizes = [1, 2, 128], strides = [1, 1, 1]} : vector<4x2x128xf32> to vector<1x2x128xf32>
    %284 = vector.shape_cast %283 : vector<1x2x128xf32> to vector<2x128xf32>
    %c0_97 = arith.constant 0 : index
    %c5 = arith.constant 5 : index
    %285 = memref.load %arg2[%c0_97, %c5] : memref<4x8xf32, #tpu.memory_space<smem>>
    %286 = vector.broadcast %285 : f32 to vector<2x128xf32>
    %287 = arith.mulf %284, %286 : vector<2x128xf32>
    %c5_98 = arith.constant 5 : index
    %288 = memref.load %arg3[%c5_98] : memref<8xf32, #tpu.memory_space<smem>>
    %289 = vector.broadcast %288 : f32 to vector<2x128xf32>
    %290 = arith.addf %287, %289 : vector<2x128xf32>
    %291 = vector.extract_strided_slice %1 {offsets = [1, 0, 0], sizes = [1, 2, 128], strides = [1, 1, 1]} : vector<4x2x128xf32> to vector<1x2x128xf32>
    %292 = vector.shape_cast %291 : vector<1x2x128xf32> to vector<2x128xf32>
    %c1_99 = arith.constant 1 : index
    %c5_100 = arith.constant 5 : index
    %293 = memref.load %arg2[%c1_99, %c5_100] : memref<4x8xf32, #tpu.memory_space<smem>>
    %294 = vector.broadcast %293 : f32 to vector<2x128xf32>
    %295 = arith.mulf %292, %294 : vector<2x128xf32>
    %296 = arith.addf %290, %295 : vector<2x128xf32>
    %297 = vector.extract_strided_slice %1 {offsets = [2, 0, 0], sizes = [1, 2, 128], strides = [1, 1, 1]} : vector<4x2x128xf32> to vector<1x2x128xf32>
    %298 = vector.shape_cast %297 : vector<1x2x128xf32> to vector<2x128xf32>
    %c2_101 = arith.constant 2 : index
    %c5_102 = arith.constant 5 : index
    %299 = memref.load %arg2[%c2_101, %c5_102] : memref<4x8xf32, #tpu.memory_space<smem>>
    %300 = vector.broadcast %299 : f32 to vector<2x128xf32>
    %301 = arith.mulf %298, %300 : vector<2x128xf32>
    %302 = arith.addf %296, %301 : vector<2x128xf32>
    %303 = vector.extract_strided_slice %1 {offsets = [3, 0, 0], sizes = [1, 2, 128], strides = [1, 1, 1]} : vector<4x2x128xf32> to vector<1x2x128xf32>
    %304 = vector.shape_cast %303 : vector<1x2x128xf32> to vector<2x128xf32>
    %c3_103 = arith.constant 3 : index
    %c5_104 = arith.constant 5 : index
    %305 = memref.load %arg2[%c3_103, %c5_104] : memref<4x8xf32, #tpu.memory_space<smem>>
    %306 = vector.broadcast %305 : f32 to vector<2x128xf32>
    %307 = arith.mulf %304, %306 : vector<2x128xf32>
    %308 = arith.addf %302, %307 : vector<2x128xf32>
    %309 = vector.extract_strided_slice %3 {offsets = [0, 0, 0], sizes = [1, 2, 128], strides = [1, 1, 1]} : vector<4x2x128xf32> to vector<1x2x128xf32>
    %310 = vector.shape_cast %309 : vector<1x2x128xf32> to vector<2x128xf32>
    %c0_105 = arith.constant 0 : index
    %c5_106 = arith.constant 5 : index
    %311 = memref.load %arg4[%c0_105, %c5_106] : memref<4x8xf32, #tpu.memory_space<smem>>
    %312 = vector.broadcast %311 : f32 to vector<2x128xf32>
    %313 = arith.mulf %310, %312 : vector<2x128xf32>
    %314 = arith.addf %308, %313 : vector<2x128xf32>
    %315 = vector.extract_strided_slice %3 {offsets = [1, 0, 0], sizes = [1, 2, 128], strides = [1, 1, 1]} : vector<4x2x128xf32> to vector<1x2x128xf32>
    %316 = vector.shape_cast %315 : vector<1x2x128xf32> to vector<2x128xf32>
    %c1_107 = arith.constant 1 : index
    %c5_108 = arith.constant 5 : index
    %317 = memref.load %arg4[%c1_107, %c5_108] : memref<4x8xf32, #tpu.memory_space<smem>>
    %318 = vector.broadcast %317 : f32 to vector<2x128xf32>
    %319 = arith.mulf %316, %318 : vector<2x128xf32>
    %320 = arith.addf %314, %319 : vector<2x128xf32>
    %321 = vector.extract_strided_slice %3 {offsets = [2, 0, 0], sizes = [1, 2, 128], strides = [1, 1, 1]} : vector<4x2x128xf32> to vector<1x2x128xf32>
    %322 = vector.shape_cast %321 : vector<1x2x128xf32> to vector<2x128xf32>
    %c2_109 = arith.constant 2 : index
    %c5_110 = arith.constant 5 : index
    %323 = memref.load %arg4[%c2_109, %c5_110] : memref<4x8xf32, #tpu.memory_space<smem>>
    %324 = vector.broadcast %323 : f32 to vector<2x128xf32>
    %325 = arith.mulf %322, %324 : vector<2x128xf32>
    %326 = arith.addf %320, %325 : vector<2x128xf32>
    %327 = vector.extract_strided_slice %3 {offsets = [3, 0, 0], sizes = [1, 2, 128], strides = [1, 1, 1]} : vector<4x2x128xf32> to vector<1x2x128xf32>
    %328 = vector.shape_cast %327 : vector<1x2x128xf32> to vector<2x128xf32>
    %c3_111 = arith.constant 3 : index
    %c5_112 = arith.constant 5 : index
    %329 = memref.load %arg4[%c3_111, %c5_112] : memref<4x8xf32, #tpu.memory_space<smem>>
    %330 = vector.broadcast %329 : f32 to vector<2x128xf32>
    %331 = arith.mulf %328, %330 : vector<2x128xf32>
    %332 = arith.addf %326, %331 : vector<2x128xf32>
    %cst_113 = arith.constant 0.000000e+00 : f32
    %333 = vector.broadcast %cst_113 : f32 to vector<2x128xf32>
    %334 = arith.maximumf %332, %333 : vector<2x128xf32>
    %c5_114 = arith.constant 5 : index
    %335 = memref.load %arg5[%c5_114] : memref<8xf32, #tpu.memory_space<smem>>
    %336 = vector.broadcast %335 : f32 to vector<2x128xf32>
    %337 = arith.mulf %334, %336 : vector<2x128xf32>
    %338 = arith.addf %282, %337 : vector<2x128xf32>
    %339 = vector.extract_strided_slice %1 {offsets = [0, 0, 0], sizes = [1, 2, 128], strides = [1, 1, 1]} : vector<4x2x128xf32> to vector<1x2x128xf32>
    %340 = vector.shape_cast %339 : vector<1x2x128xf32> to vector<2x128xf32>
    %c0_115 = arith.constant 0 : index
    %c6 = arith.constant 6 : index
    %341 = memref.load %arg2[%c0_115, %c6] : memref<4x8xf32, #tpu.memory_space<smem>>
    %342 = vector.broadcast %341 : f32 to vector<2x128xf32>
    %343 = arith.mulf %340, %342 : vector<2x128xf32>
    %c6_116 = arith.constant 6 : index
    %344 = memref.load %arg3[%c6_116] : memref<8xf32, #tpu.memory_space<smem>>
    %345 = vector.broadcast %344 : f32 to vector<2x128xf32>
    %346 = arith.addf %343, %345 : vector<2x128xf32>
    %347 = vector.extract_strided_slice %1 {offsets = [1, 0, 0], sizes = [1, 2, 128], strides = [1, 1, 1]} : vector<4x2x128xf32> to vector<1x2x128xf32>
    %348 = vector.shape_cast %347 : vector<1x2x128xf32> to vector<2x128xf32>
    %c1_117 = arith.constant 1 : index
    %c6_118 = arith.constant 6 : index
    %349 = memref.load %arg2[%c1_117, %c6_118] : memref<4x8xf32, #tpu.memory_space<smem>>
    %350 = vector.broadcast %349 : f32 to vector<2x128xf32>
    %351 = arith.mulf %348, %350 : vector<2x128xf32>
    %352 = arith.addf %346, %351 : vector<2x128xf32>
    %353 = vector.extract_strided_slice %1 {offsets = [2, 0, 0], sizes = [1, 2, 128], strides = [1, 1, 1]} : vector<4x2x128xf32> to vector<1x2x128xf32>
    %354 = vector.shape_cast %353 : vector<1x2x128xf32> to vector<2x128xf32>
    %c2_119 = arith.constant 2 : index
    %c6_120 = arith.constant 6 : index
    %355 = memref.load %arg2[%c2_119, %c6_120] : memref<4x8xf32, #tpu.memory_space<smem>>
    %356 = vector.broadcast %355 : f32 to vector<2x128xf32>
    %357 = arith.mulf %354, %356 : vector<2x128xf32>
    %358 = arith.addf %352, %357 : vector<2x128xf32>
    %359 = vector.extract_strided_slice %1 {offsets = [3, 0, 0], sizes = [1, 2, 128], strides = [1, 1, 1]} : vector<4x2x128xf32> to vector<1x2x128xf32>
    %360 = vector.shape_cast %359 : vector<1x2x128xf32> to vector<2x128xf32>
    %c3_121 = arith.constant 3 : index
    %c6_122 = arith.constant 6 : index
    %361 = memref.load %arg2[%c3_121, %c6_122] : memref<4x8xf32, #tpu.memory_space<smem>>
    %362 = vector.broadcast %361 : f32 to vector<2x128xf32>
    %363 = arith.mulf %360, %362 : vector<2x128xf32>
    %364 = arith.addf %358, %363 : vector<2x128xf32>
    %365 = vector.extract_strided_slice %3 {offsets = [0, 0, 0], sizes = [1, 2, 128], strides = [1, 1, 1]} : vector<4x2x128xf32> to vector<1x2x128xf32>
    %366 = vector.shape_cast %365 : vector<1x2x128xf32> to vector<2x128xf32>
    %c0_123 = arith.constant 0 : index
    %c6_124 = arith.constant 6 : index
    %367 = memref.load %arg4[%c0_123, %c6_124] : memref<4x8xf32, #tpu.memory_space<smem>>
    %368 = vector.broadcast %367 : f32 to vector<2x128xf32>
    %369 = arith.mulf %366, %368 : vector<2x128xf32>
    %370 = arith.addf %364, %369 : vector<2x128xf32>
    %371 = vector.extract_strided_slice %3 {offsets = [1, 0, 0], sizes = [1, 2, 128], strides = [1, 1, 1]} : vector<4x2x128xf32> to vector<1x2x128xf32>
    %372 = vector.shape_cast %371 : vector<1x2x128xf32> to vector<2x128xf32>
    %c1_125 = arith.constant 1 : index
    %c6_126 = arith.constant 6 : index
    %373 = memref.load %arg4[%c1_125, %c6_126] : memref<4x8xf32, #tpu.memory_space<smem>>
    %374 = vector.broadcast %373 : f32 to vector<2x128xf32>
    %375 = arith.mulf %372, %374 : vector<2x128xf32>
    %376 = arith.addf %370, %375 : vector<2x128xf32>
    %377 = vector.extract_strided_slice %3 {offsets = [2, 0, 0], sizes = [1, 2, 128], strides = [1, 1, 1]} : vector<4x2x128xf32> to vector<1x2x128xf32>
    %378 = vector.shape_cast %377 : vector<1x2x128xf32> to vector<2x128xf32>
    %c2_127 = arith.constant 2 : index
    %c6_128 = arith.constant 6 : index
    %379 = memref.load %arg4[%c2_127, %c6_128] : memref<4x8xf32, #tpu.memory_space<smem>>
    %380 = vector.broadcast %379 : f32 to vector<2x128xf32>
    %381 = arith.mulf %378, %380 : vector<2x128xf32>
    %382 = arith.addf %376, %381 : vector<2x128xf32>
    %383 = vector.extract_strided_slice %3 {offsets = [3, 0, 0], sizes = [1, 2, 128], strides = [1, 1, 1]} : vector<4x2x128xf32> to vector<1x2x128xf32>
    %384 = vector.shape_cast %383 : vector<1x2x128xf32> to vector<2x128xf32>
    %c3_129 = arith.constant 3 : index
    %c6_130 = arith.constant 6 : index
    %385 = memref.load %arg4[%c3_129, %c6_130] : memref<4x8xf32, #tpu.memory_space<smem>>
    %386 = vector.broadcast %385 : f32 to vector<2x128xf32>
    %387 = arith.mulf %384, %386 : vector<2x128xf32>
    %388 = arith.addf %382, %387 : vector<2x128xf32>
    %cst_131 = arith.constant 0.000000e+00 : f32
    %389 = vector.broadcast %cst_131 : f32 to vector<2x128xf32>
    %390 = arith.maximumf %388, %389 : vector<2x128xf32>
    %c6_132 = arith.constant 6 : index
    %391 = memref.load %arg5[%c6_132] : memref<8xf32, #tpu.memory_space<smem>>
    %392 = vector.broadcast %391 : f32 to vector<2x128xf32>
    %393 = arith.mulf %390, %392 : vector<2x128xf32>
    %394 = arith.addf %338, %393 : vector<2x128xf32>
    %395 = vector.extract_strided_slice %1 {offsets = [0, 0, 0], sizes = [1, 2, 128], strides = [1, 1, 1]} : vector<4x2x128xf32> to vector<1x2x128xf32>
    %396 = vector.shape_cast %395 : vector<1x2x128xf32> to vector<2x128xf32>
    %c0_133 = arith.constant 0 : index
    %c7 = arith.constant 7 : index
    %397 = memref.load %arg2[%c0_133, %c7] : memref<4x8xf32, #tpu.memory_space<smem>>
    %398 = vector.broadcast %397 : f32 to vector<2x128xf32>
    %399 = arith.mulf %396, %398 : vector<2x128xf32>
    %c7_134 = arith.constant 7 : index
    %400 = memref.load %arg3[%c7_134] : memref<8xf32, #tpu.memory_space<smem>>
    %401 = vector.broadcast %400 : f32 to vector<2x128xf32>
    %402 = arith.addf %399, %401 : vector<2x128xf32>
    %403 = vector.extract_strided_slice %1 {offsets = [1, 0, 0], sizes = [1, 2, 128], strides = [1, 1, 1]} : vector<4x2x128xf32> to vector<1x2x128xf32>
    %404 = vector.shape_cast %403 : vector<1x2x128xf32> to vector<2x128xf32>
    %c1_135 = arith.constant 1 : index
    %c7_136 = arith.constant 7 : index
    %405 = memref.load %arg2[%c1_135, %c7_136] : memref<4x8xf32, #tpu.memory_space<smem>>
    %406 = vector.broadcast %405 : f32 to vector<2x128xf32>
    %407 = arith.mulf %404, %406 : vector<2x128xf32>
    %408 = arith.addf %402, %407 : vector<2x128xf32>
    %409 = vector.extract_strided_slice %1 {offsets = [2, 0, 0], sizes = [1, 2, 128], strides = [1, 1, 1]} : vector<4x2x128xf32> to vector<1x2x128xf32>
    %410 = vector.shape_cast %409 : vector<1x2x128xf32> to vector<2x128xf32>
    %c2_137 = arith.constant 2 : index
    %c7_138 = arith.constant 7 : index
    %411 = memref.load %arg2[%c2_137, %c7_138] : memref<4x8xf32, #tpu.memory_space<smem>>
    %412 = vector.broadcast %411 : f32 to vector<2x128xf32>
    %413 = arith.mulf %410, %412 : vector<2x128xf32>
    %414 = arith.addf %408, %413 : vector<2x128xf32>
    %415 = vector.extract_strided_slice %1 {offsets = [3, 0, 0], sizes = [1, 2, 128], strides = [1, 1, 1]} : vector<4x2x128xf32> to vector<1x2x128xf32>
    %416 = vector.shape_cast %415 : vector<1x2x128xf32> to vector<2x128xf32>
    %c3_139 = arith.constant 3 : index
    %c7_140 = arith.constant 7 : index
    %417 = memref.load %arg2[%c3_139, %c7_140] : memref<4x8xf32, #tpu.memory_space<smem>>
    %418 = vector.broadcast %417 : f32 to vector<2x128xf32>
    %419 = arith.mulf %416, %418 : vector<2x128xf32>
    %420 = arith.addf %414, %419 : vector<2x128xf32>
    %421 = vector.extract_strided_slice %3 {offsets = [0, 0, 0], sizes = [1, 2, 128], strides = [1, 1, 1]} : vector<4x2x128xf32> to vector<1x2x128xf32>
    %422 = vector.shape_cast %421 : vector<1x2x128xf32> to vector<2x128xf32>
    %c0_141 = arith.constant 0 : index
    %c7_142 = arith.constant 7 : index
    %423 = memref.load %arg4[%c0_141, %c7_142] : memref<4x8xf32, #tpu.memory_space<smem>>
    %424 = vector.broadcast %423 : f32 to vector<2x128xf32>
    %425 = arith.mulf %422, %424 : vector<2x128xf32>
    %426 = arith.addf %420, %425 : vector<2x128xf32>
    %427 = vector.extract_strided_slice %3 {offsets = [1, 0, 0], sizes = [1, 2, 128], strides = [1, 1, 1]} : vector<4x2x128xf32> to vector<1x2x128xf32>
    %428 = vector.shape_cast %427 : vector<1x2x128xf32> to vector<2x128xf32>
    %c1_143 = arith.constant 1 : index
    %c7_144 = arith.constant 7 : index
    %429 = memref.load %arg4[%c1_143, %c7_144] : memref<4x8xf32, #tpu.memory_space<smem>>
    %430 = vector.broadcast %429 : f32 to vector<2x128xf32>
    %431 = arith.mulf %428, %430 : vector<2x128xf32>
    %432 = arith.addf %426, %431 : vector<2x128xf32>
    %433 = vector.extract_strided_slice %3 {offsets = [2, 0, 0], sizes = [1, 2, 128], strides = [1, 1, 1]} : vector<4x2x128xf32> to vector<1x2x128xf32>
    %434 = vector.shape_cast %433 : vector<1x2x128xf32> to vector<2x128xf32>
    %c2_145 = arith.constant 2 : index
    %c7_146 = arith.constant 7 : index
    %435 = memref.load %arg4[%c2_145, %c7_146] : memref<4x8xf32, #tpu.memory_space<smem>>
    %436 = vector.broadcast %435 : f32 to vector<2x128xf32>
    %437 = arith.mulf %434, %436 : vector<2x128xf32>
    %438 = arith.addf %432, %437 : vector<2x128xf32>
    %439 = vector.extract_strided_slice %3 {offsets = [3, 0, 0], sizes = [1, 2, 128], strides = [1, 1, 1]} : vector<4x2x128xf32> to vector<1x2x128xf32>
    %440 = vector.shape_cast %439 : vector<1x2x128xf32> to vector<2x128xf32>
    %c3_147 = arith.constant 3 : index
    %c7_148 = arith.constant 7 : index
    %441 = memref.load %arg4[%c3_147, %c7_148] : memref<4x8xf32, #tpu.memory_space<smem>>
    %442 = vector.broadcast %441 : f32 to vector<2x128xf32>
    %443 = arith.mulf %440, %442 : vector<2x128xf32>
    %444 = arith.addf %438, %443 : vector<2x128xf32>
    %cst_149 = arith.constant 0.000000e+00 : f32
    %445 = vector.broadcast %cst_149 : f32 to vector<2x128xf32>
    %446 = arith.maximumf %444, %445 : vector<2x128xf32>
    %c7_150 = arith.constant 7 : index
    %447 = memref.load %arg5[%c7_150] : memref<8xf32, #tpu.memory_space<smem>>
    %448 = vector.broadcast %447 : f32 to vector<2x128xf32>
    %449 = arith.mulf %446, %448 : vector<2x128xf32>
    %450 = arith.addf %394, %449 : vector<2x128xf32>
    %c0_151 = arith.constant 0 : index
    %451 = memref.load %arg6[%c0_151] : memref<1xf32, #tpu.memory_space<smem>>
    %452 = vector.broadcast %451 : f32 to vector<2x128xf32>
    %453 = arith.addf %450, %452 : vector<2x128xf32>
    %454 = arith.negf %453 : vector<2x128xf32>
    %455 = math.exp %454 : vector<2x128xf32>
    %cst_152 = arith.constant 1.000000e+00 : f32
    %456 = vector.broadcast %cst_152 : f32 to vector<2x128xf32>
    %457 = arith.addf %456, %455 : vector<2x128xf32>
    %458 = arith.divf %456, %457 : vector<2x128xf32>
    %459 = vector.shape_cast %458 : vector<2x128xf32> to vector<1x2x128xf32>
    %460 = vector.broadcast %459 : vector<1x2x128xf32> to vector<4x2x128xf32>
    %461 = arith.mulf %3, %460 : vector<4x2x128xf32>
    %c0_153 = arith.constant 0 : index
    %c0_154 = arith.constant 0 : index
    %c0_155 = arith.constant 0 : index
    %c0_156 = arith.constant 0 : index
    %462 = vector.load %arg9[%c0_153, %c0_154, %c0_155, %c0_156] : memref<1x4x2x128xf32, #tpu.memory_space<vmem>>, vector<1x4x2x128xf32>
    %463 = vector.shape_cast %462 : vector<1x4x2x128xf32> to vector<4x2x128xf32>
    %464 = vector.shape_cast %461 : vector<4x2x128xf32> to vector<1x4x2x128xf32>
    tpu.vector_store %arg9[%c0_153, %c0_154, %c0_155, %c0_156], %464 {strides = array<i32>} : memref<1x4x2x128xf32, #tpu.memory_space<vmem>>, vector<1x4x2x128xf32>,
    return
  }
  func.func @transform_0(%arg0: i32, %arg1: i32) -> (i32, i32) {
    %c0_i32 = arith.constant 0 : i32
    %c0_i32_0 = arith.constant 0 : i32
    %c0_i32_1 = arith.constant 0 : i32
    return %c0_i32, %c0_i32_0 : i32, i32
  }
  func.func @transform_1(%arg0: i32, %arg1: i32) -> i32 {
    %c0_i32 = arith.constant 0 : i32
    %c0_i32_0 = arith.constant 0 : i32
    return %c0_i32 : i32
  }
  func.func @transform_2(%arg0: i32, %arg1: i32) -> (i32, i32) {
    %c0_i32 = arith.constant 0 : i32
    %c0_i32_0 = arith.constant 0 : i32
    %c0_i32_1 = arith.constant 0 : i32
    return %c0_i32, %c0_i32_0 : i32, i32
  }
  func.func @transform_3(%arg0: i32, %arg1: i32) -> i32 {
    %c0_i32 = arith.constant 0 : i32
    %c0_i32_0 = arith.constant 0 : i32
    return %c0_i32 : i32
  }
  func.func @transform_4(%arg0: i32, %arg1: i32) -> i32 {
    %c0_i32 = arith.constant 0 : i32
    %c0_i32_0 = arith.constant 0 : i32
    return %c0_i32 : i32
  }
  func.func @transform_5(%arg0: i32, %arg1: i32) -> (i32, i32, i32, i32) {
    %c0_i32 = arith.constant 0 : i32
    %c0_i32_0 = arith.constant 0 : i32
    %c0_i32_1 = arith.constant 0 : i32
    return %arg0, %c0_i32, %arg1, %c0_i32_0 : i32, i32, i32, i32
  }
  func.func @transform_6(%arg0: i32, %arg1: i32) -> (i32, i32, i32, i32) {
    %c0_i32 = arith.constant 0 : i32
    %c0_i32_0 = arith.constant 0 : i32
    %c0_i32_1 = arith.constant 0 : i32
    return %arg0, %c0_i32, %arg1, %c0_i32_0 : i32, i32, i32, i32
  }
  func.func @transform_7(%arg0: i32, %arg1: i32) -> (i32, i32, i32, i32) {
    %c0_i32 = arith.constant 0 : i32
    %c0_i32_0 = arith.constant 0 : i32
    %c0_i32_1 = arith.constant 0 : i32
    return %arg0, %c0_i32, %arg1, %c0_i32_0 : i32, i32, i32, i32
  }
}

</mosaic_0001>

<llo_original>
// kernel: tpu_custom_call.1
$region0: #{tpu_custom_call.1}
  #allocation0 [shape = 'u32[]', space=smem, size = 0x4, offset = 0x4, fixed_abs, tag = 'smem constant byte address 0x4 - core index']
  #allocation1 [shape = 'u32[144,128]{1,0:T(1,128)}', space=vmem, size = 0x12000, scoped, tag = 'internal scratch']
  #allocation2 [shape = 'f32[1]{0:T(128)S(6)}', space=smem, size = 0x200, scoped, tag = 'scoped memory for tpu_custom_call.1']
  %s0 = inlined_call_operand.hbm [shape: f32[4,8], index: 0, kind: input, shape index: {}]
  %s1 = inlined_call_operand.vmem [shape: f32[8], index: 1, kind: input, shape index: {}]
  %s2 = inlined_call_operand.hbm [shape: f32[4,8], index: 2, kind: input, shape index: {}]
  %s3 = inlined_call_operand.vmem [shape: f32[8], index: 3, kind: input, shape index: {}]
  %s4 = inlined_call_operand.<no memory space> [shape: f32[1], index: 4, kind: input, shape index: {}]
  %s5 = inlined_call_operand.vmem [shape: f32[2,4,2,128], index: 5, kind: input, shape index: {}]
  %s6 = inlined_call_operand.hbm [shape: f32[2,4,2,128], index: 6, kind: input, shape index: {}]
  %s7 = inlined_call_operand.hbm [shape: f32[2,4,2,128], index: 7, kind: output, shape index: {}]
  %s8 = sld [smem:[#allocation0]]
  $region81: #{tpu_custom_call.1} parent=0
    _
  %s10 = ssub.s32 1, %s8
  %s11 = scalar_select 0, %s10, %s8
  %12 = sst [smem:[#allocation2]] %s4
  $region1: #{tpu_custom_call.1} parent=0
    #allocation3 [shape = 'u8[2048]{0}', space=smem, size = 0x800, scoped, tag = 'input window, operand 0, single buffered']
    #allocation4 [shape = 's32[2]{0}', space=sflag, size = 0x8, scoped, tag = 'scoped memory for tpu_custom_call.1']
    #allocation5 [shape = 's32[2]{0}', space=sflag, size = 0x8, scoped, tag = 'scoped memory for tpu_custom_call.1']
    #allocation6 [shape = 's32[2]{0}', space=sflag, size = 0x8, scoped, tag = 'scoped memory for tpu_custom_call.1']
    #allocation7 [shape = 's32[2]{0}', space=sflag, size = 0x8, scoped, tag = 'scoped memory for tpu_custom_call.1']
    #allocation8 [shape = 'u8[512]{0}', space=smem, size = 0x200, scoped, tag = 'input window, operand 1, single buffered']
    #allocation9 [shape = 'u8[2048]{0}', space=smem, size = 0x800, scoped, tag = 'input window, operand 2, single buffered']
    #allocation10 [shape = 's32[1]{0}', space=sflag, size = 0x4, scoped, tag = 'scoped memory for tpu_custom_call.1']
    #allocation11 [shape = 'u8[512]{0}', space=smem, size = 0x200, scoped, tag = 'input window, operand 3, single buffered']
    #allocation12 [shape = 's32[1]{0}', space=sflag, size = 0x4, scoped, tag = 'scoped memory for tpu_custom_call.1']
    #allocation13 [shape = 'u8[8192]{0}', space=vmem, size = 0x2000, scoped, tag = 'input window, operand 6']
    #allocation14 [shape = 'u8[8192]{0}', space=vmem, size = 0x2000, scoped, tag = 'output window, operand 0']
    %13 = vsyncpa [#allocation6], 0
    %14 = vsyncpa [#allocation7], 0
    %15 = vsyncpa [#allocation10], 0
    %16 = vsyncpa [#allocation12], 0
    %17 = vsyncpa [#allocation4], 0
    %s18 = scalar_lea.sflag [#allocation4], 1
    %19 = vsyncpa %s18, 0
    %20 = vsyncpa [#allocation5], 0
    %s21 = scalar_lea.sflag [#allocation5], 1
    %22 = vsyncpa %s21, 0
    loop: start=0, step=1, limit=4
    $region2: #{tpu_custom_call.1} parent=1 // loop_pre_header
      _
    $region3: #{tpu_custom_call.1} parent=1 // loop_header
      %s24 = sphi 0, %s28
      %p25 = scmp.ge.s32.totalorder %s24, 4
      %s31 = sphi 0, %s43
      %s32 = sphi 0, %s39
      %s33 = sphi 0, %s31
      %s34 = sphi 0, %s32
      %s35 = sphi 0, %s33
      %s36 = sphi 0, %s34
      %s44 = sphi 0, %s44
      %s46 = sphi 0, %s44
      %s47 = sphi 0, %s46
      %s61 = sphi 0, %s47
      %s65 = sphi 0, %s65
      %s67 = sphi 0, %s65
      %s68 = sphi 0, %s67
      %s82 = sphi 0, %s68
      %s86 = sphi 0, %s86
      %s88 = sphi 0, %s86
      %s89 = sphi 0, %s88
      %s103 = sphi 0, %s89
      %s107 = sphi 0, %s107
      %s109 = sphi 0, %s107
      %s110 = sphi 0, %s109
      %s124 = sphi 0, %s110
      %s128 = sphi 0, %s128
      %s130 = sphi 0, %s128
      %s131 = sphi 0, %s130
      %s145 = sphi 0, %s131
      %s153 = sphi 0, %s155
      %s156 = sphi 0, %s153
      %s157 = sphi 0, %s156
      %s173 = sphi 0, %s157
      %s181 = sphi 0, %s183
      %s184 = sphi 0, %s181
      %s185 = sphi 0, %s184
      %s201 = sphi 0, %s185
      %s209 = sphi 0, %s211
      %s212 = sphi 0, %s209
      %s213 = sphi 0, %s212
      %s229 = sphi 0, %s213
    $region4: #{tpu_custom_call.1} parent=1 // loop_header_branch
      %27 = sbr.rel (%p25) target = $region8
    $region5: #{tpu_custom_call.1} parent=1 // loop_body
      %s29 = ssub.s32 %s24, 1
      %s30 = ssub.s32 %s24, 2
      %s37 = sadd.s32 1, %s32
      %p38 = scmp.ge.s32.totalorder %s37, 1
      %s39 = scalar_select %p38, 0, %s37
      %s40 = sadd.s32 1, %s31
      %s41 = scalar_select %p38, %s40, %s31
      %p42 = scmp.ge.s32.totalorder %s41, 2
      %s43 = scalar_select %p42, 0, %s41
      %s45 = sadd.s32 %s44, 1
      %p48 = scmp.eq.s32.totalorder %s24, 1
      %p49 = scmp.ne.s32.totalorder %s44, %s46
      %p50 = scmp.eq.s32.totalorder %s24, 0
      %p51 = por %p49, %p50
      %p52 = scmp.ne.s32.totalorder %s44, %s46
      %p53 = scmp.eq.s32.totalorder %s29, 1
      %p54 = por %p52, %p53
      %p55 = scmp.ne.s32.totalorder %s46, %s47
      %p56 = scmp.eq.s32.totalorder %s29, 0
      %p57 = por %p55, %p56
      %p58 = scmp.ne.s32.totalorder %s46, %s47
      %p59 = scmp.eq.s32.totalorder %s30, 1
      %p60 = por %p58, %p59
      %p62 = scmp.ne.s32.totalorder %s47, %s61
      %p63 = scmp.eq.s32.totalorder %s30, 0
      %p64 = por %p62, %p63
      %s66 = sadd.s32 %s65, 1
      %p69 = scmp.eq.s32.totalorder %s24, 1
      %p70 = scmp.ne.s32.totalorder %s65, %s67
      %p71 = scmp.eq.s32.totalorder %s24, 0
      %p72 = por %p70, %p71
      %p73 = scmp.ne.s32.totalorder %s65, %s67
      %p74 = scmp.eq.s32.totalorder %s29, 1
      %p75 = por %p73, %p74
      %p76 = scmp.ne.s32.totalorder %s67, %s68
      %p77 = scmp.eq.s32.totalorder %s29, 0
      %p78 = por %p76, %p77
      %p79 = scmp.ne.s32.totalorder %s67, %s68
      %p80 = scmp.eq.s32.totalorder %s30, 1
      %p81 = por %p79, %p80
      %p83 = scmp.ne.s32.totalorder %s68, %s82
      %p84 = scmp.eq.s32.totalorder %s30, 0
      %p85 = por %p83, %p84
      %s87 = sadd.s32 %s86, 1
      %p90 = scmp.eq.s32.totalorder %s24, 1
      %p91 = scmp.ne.s32.totalorder %s86, %s88
      %p92 = scmp.eq.s32.totalorder %s24, 0
      %p93 = por %p91, %p92
      %p94 = scmp.ne.s32.totalorder %s86, %s88
      %p95 = scmp.eq.s32.totalorder %s29, 1
      %p96 = por %p94, %p95
      %p97 = scmp.ne.s32.totalorder %s88, %s89
      %p98 = scmp.eq.s32.totalorder %s29, 0
      %p99 = por %p97, %p98
      %p100 = scmp.ne.s32.totalorder %s88, %s89
      %p101 = scmp.eq.s32.totalorder %s30, 1
      %p102 = por %p100, %p101
      %p104 = scmp.ne.s32.totalorder %s89, %s103
      %p105 = scmp.eq.s32.totalorder %s30, 0
      %p106 = por %p104, %p105
      %s108 = sadd.s32 %s107, 1
      %p111 = scmp.eq.s32.totalorder %s24, 1
      %p112 = scmp.ne.s32.totalorder %s107, %s109
      %p113 = scmp.eq.s32.totalorder %s24, 0
      %p114 = por %p112, %p113
      %p115 = scmp.ne.s32.totalorder %s107, %s109
      %p116 = scmp.eq.s32.totalorder %s29, 1
      %p117 = por %p115, %p116
      %p118 = scmp.ne.s32.totalorder %s109, %s110
      %p119 = scmp.eq.s32.totalorder %s29, 0
      %p120 = por %p118, %p119
      %p121 = scmp.ne.s32.totalorder %s109, %s110
      %p122 = scmp.eq.s32.totalorder %s30, 1
      %p123 = por %p121, %p122
      %p125 = scmp.ne.s32.totalorder %s110, %s124
      %p126 = scmp.eq.s32.totalorder %s30, 0
      %p127 = por %p125, %p126
      %s129 = sadd.s32 %s128, 1
      %p132 = scmp.eq.s32.totalorder %s24, 1
      %p133 = scmp.ne.s32.totalorder %s128, %s130
      %p134 = scmp.eq.s32.totalorder %s24, 0
      %p135 = por %p133, %p134
      %p136 = scmp.ne.s32.totalorder %s128, %s130
      %p137 = scmp.eq.s32.totalorder %s29, 1
      %p138 = por %p136, %p137
      %p139 = scmp.ne.s32.totalorder %s130, %s131
      %p140 = scmp.eq.s32.totalorder %s29, 0
      %p141 = por %p139, %p140
      %p142 = scmp.ne.s32.totalorder %s130, %s131
      %p143 = scmp.eq.s32.totalorder %s30, 1
      %p144 = por %p142, %p143
      %p146 = scmp.ne.s32.totalorder %s131, %s145
      %p147 = scmp.eq.s32.totalorder %s30, 0
      %p148 = por %p146, %p147
      %s149 = ssub.s32 %s31, %s43
      %s150 = ssub.s32 %s32, %s39
      %s151 = sor.u32 %s149, %s150
      %p152 = scmp.eq.s32.totalorder %s151, 0
      %s154 = sadd.s32 %s153, 1
      %s155 = scalar_select %p152, %s153, %s154
      %p158 = pneg %p152
      %p159 = scmp.eq.s32.totalorder %s24, 1
      %p160 = por %p158, %p159
      %p161 = scmp.ne.s32.totalorder %s153, %s156
      %p162 = scmp.eq.s32.totalorder %s24, 0
      %p163 = por %p161, %p162
      %p164 = scmp.ne.s32.totalorder %s153, %s156
      %p165 = scmp.eq.s32.totalorder %s29, 1
      %p166 = por %p164, %p165
      %p167 = scmp.ne.s32.totalorder %s156, %s157
      %p168 = scmp.eq.s32.totalorder %s29, 0
      %p169 = por %p167, %p168
      %p170 = scmp.ne.s32.totalorder %s156, %s157
      %p171 = scmp.eq.s32.totalorder %s30, 1
      %p172 = por %p170, %p171
      %p174 = scmp.ne.s32.totalorder %s157, %s173
      %p175 = scmp.eq.s32.totalorder %s30, 0
      %p176 = por %p174, %p175
      %s177 = ssub.s32 %s31, %s43
      %s178 = ssub.s32 %s32, %s39
      %s179 = sor.u32 %s177, %s178
      %p180 = scmp.eq.s32.totalorder %s179, 0
      %s182 = sadd.s32 %s181, 1
      %s183 = scalar_select %p180, %s181, %s182
      %p186 = pneg %p180
      %p187 = scmp.eq.s32.totalorder %s24, 1
      %p188 = por %p186, %p187
      %p189 = scmp.ne.s32.totalorder %s181, %s184
      %p190 = scmp.eq.s32.totalorder %s24, 0
      %p191 = por %p189, %p190
      %p192 = scmp.ne.s32.totalorder %s181, %s184
      %p193 = scmp.eq.s32.totalorder %s29, 1
      %p194 = por %p192, %p193
      %p195 = scmp.ne.s32.totalorder %s184, %s185
      %p196 = scmp.eq.s32.totalorder %s29, 0
      %p197 = por %p195, %p196
      %p198 = scmp.ne.s32.totalorder %s184, %s185
      %p199 = scmp.eq.s32.totalorder %s30, 1
      %p200 = por %p198, %p199
      %p202 = scmp.ne.s32.totalorder %s185, %s201
      %p203 = scmp.eq.s32.totalorder %s30, 0
      %p204 = por %p202, %p203
      %s205 = ssub.s32 %s31, %s43
      %s206 = ssub.s32 %s32, %s39
      %s207 = sor.u32 %s205, %s206
      %p208 = scmp.eq.s32.totalorder %s207, 0
      %s210 = sadd.s32 %s209, 1
      %s211 = scalar_select %p208, %s209, %s210
      %p214 = pneg %p208
      %p215 = scmp.eq.s32.totalorder %s24, 1
      %p216 = por %p214, %p215
      %p217 = scmp.ne.s32.totalorder %s209, %s212
      %p218 = scmp.eq.s32.totalorder %s24, 0
      %p219 = por %p217, %p218
      %p220 = scmp.ne.s32.totalorder %s209, %s212
      %p221 = scmp.eq.s32.totalorder %s29, 1
      %p222 = por %p220, %p221
      %p223 = scmp.ne.s32.totalorder %s212, %s213
      %p224 = scmp.eq.s32.totalorder %s29, 0
      %p225 = por %p223, %p224
      %p226 = scmp.ne.s32.totalorder %s212, %s213
      %p227 = scmp.eq.s32.totalorder %s30, 1
      %p228 = por %p226, %p227
      %p230 = scmp.ne.s32.totalorder %s213, %s229
      %p231 = scmp.eq.s32.totalorder %s30, 0
      %p232 = por %p230, %p231
      %p233 = scmp.le.s32.totalorder 1, %s24
      %p234 = scmp.lt.s32.totalorder %s24, 3
      %p235 = pnand %p233, %p234
      %p236 = pneg %p235
      // Predicated region
      $region9: #{tpu_custom_call.1} parent=5 // pred_check
        _
      $region10: #{tpu_custom_call.1} parent=5 // pred_check_branch
        %238 = sbr.rel (%p235) target = $region12
      $region11: #{tpu_custom_call.1} parent=5 // pred_region
        %s239 = ssub.s32 %s24, 1
        // Predicated region
        $region13: #{tpu_custom_call.1} parent=11 // pred_check
          %p240 = pneg %p57
        $region14: #{tpu_custom_call.1} parent=11 // pred_check_branch
          %242 = sbr.rel (%p240) target = $region16
        $region15: #{tpu_custom_call.1} parent=11 // pred_region
          %s244 = ssub.s32 64, 64
          %245 = vsyncadd [#allocation6], %s244
          %248 = dma.hbm_to_smem %s0, 64, [#allocation3], [#allocation6]
        $region16: #{tpu_custom_call.1} parent=11 // pred_fallthru
          _
        // Predicated region
        $region17: #{tpu_custom_call.1} parent=11 // pred_check
          %p249 = pneg %p78
        $region18: #{tpu_custom_call.1} parent=11 // pred_check_branch
          %251 = sbr.rel (%p249) target = $region20
        $region19: #{tpu_custom_call.1} parent=11 // pred_region
          %s253 = ssub.s32 16, 16
          %254 = vsyncadd [#allocation7], %s253
          %s256 = sshll.u32 %s1, 4
          %s257 = int_to_ptr.vmem [resolvable:$true] %s256
          %259 = dma.vmem_to_smem %s257, 16, [#allocation8], [#allocation7]
        $region20: #{tpu_custom_call.1} parent=11 // pred_fallthru
          _
        // Predicated region
        $region21: #{tpu_custom_call.1} parent=11 // pred_check
          %p260 = pneg %p99
        $region22: #{tpu_custom_call.1} parent=11 // pred_check_branch
          %262 = sbr.rel (%p260) target = $region24
        $region23: #{tpu_custom_call.1} parent=11 // pred_region
          %s264 = ssub.s32 64, 64
          %265 = vsyncadd [#allocation10], %s264
          %268 = dma.hbm_to_smem %s2, 64, [#allocation9], [#allocation10]
        $region24: #{tpu_custom_call.1} parent=11 // pred_fallthru
          _
        // Predicated region
        $region25: #{tpu_custom_call.1} parent=11 // pred_check
          %p269 = pneg %p120
        $region26: #{tpu_custom_call.1} parent=11 // pred_check_branch
          %271 = sbr.rel (%p269) target = $region28
        $region27: #{tpu_custom_call.1} parent=11 // pred_region
          %s273 = ssub.s32 16, 16
          %274 = vsyncadd [#allocation12], %s273
          %s276 = sshll.u32 %s3, 4
          %s277 = int_to_ptr.vmem [resolvable:$true] %s276
          %279 = dma.vmem_to_smem %s277, 16, [#allocation11], [#allocation12]
        $region28: #{tpu_custom_call.1} parent=11 // pred_fallthru
          _
        // Predicated region
        $region29: #{tpu_custom_call.1} parent=11 // pred_check
          %p280 = pneg %p141
        $region30: #{tpu_custom_call.1} parent=11 // pred_check_branch
          %282 = sbr.rel (%p280) target = $region32
        $region31: #{tpu_custom_call.1} parent=11 // pred_region
          _
        $region32: #{tpu_custom_call.1} parent=11 // pred_fallthru
          _
      $region12: #{tpu_custom_call.1} parent=5 // pred_fallthru
        _
      %p283 = scmp.lt.s32.totalorder %s24, 2
      // Predicated region
      $region33: #{tpu_custom_call.1} parent=5 // pred_check
        %p284 = pneg %p283
      $region34: #{tpu_custom_call.1} parent=5 // pred_check_branch
        %286 = sbr.rel (%p284) target = $region36
      $region35: #{tpu_custom_call.1} parent=5 // pred_region
        // Predicated region
        $region37: #{tpu_custom_call.1} parent=35 // pred_check
          %p287 = pneg %p163
        $region38: #{tpu_custom_call.1} parent=35 // pred_check_branch
          %289 = sbr.rel (%p287) target = $region40
        $region39: #{tpu_custom_call.1} parent=35 // pred_region
          %p290 = scmp.lt.s32.totalorder %s31, 1
          %s291 = scalar_select %p290, %s31, 1
          %p292 = scmp.lt.s32.totalorder %s32, 0
          %s293 = scalar_select %p292, %s32, 0
          %s294 = smul.addr %s291, 4
          %s295 = sadd.s32 %s293, %s294
          %s296 = smul.addr %s295, 2
          %s297 = scalar_lea.vmem %s5, %s296
        $region40: #{tpu_custom_call.1} parent=35 // pred_fallthru
          _
        // Predicated region
        $region41: #{tpu_custom_call.1} parent=35 // pred_check
          %p298 = pneg %p191
        $region42: #{tpu_custom_call.1} parent=35 // pred_check_branch
          %300 = sbr.rel (%p298) target = $region44
        $region43: #{tpu_custom_call.1} parent=35 // pred_region
          %s301 = sand.u32 %s181, 1
          %s302 = scalar_lea.sflag [#allocation4], %s301
          %s303 = sand.u32 %s181, 1
          %s304 = smul.addr %s303, 8
          %s305 = scalar_lea.vmem [#allocation13], %s304
          %s307 = ssub.s32 128, 128
          %308 = vsyncadd %s302, %s307
          %s309 = smul.addr %s31, 4
          %s310 = sadd.s32 %s32, %s309
          %s311 = smul.addr %s310, 32
          %s312 = scalar_lea.hbm %s6, %s311
          %s313 = sshll.u32 %s305, 4
          %s314 = int_to_ptr.vmem [resolvable:$true] %s313
          %319 = dma.hbm_to_vmem [thread:$0]  %s312, 128, %s314, %s302, 32, 32, 2
        $region44: #{tpu_custom_call.1} parent=35 // pred_fallthru
          _
      $region36: #{tpu_custom_call.1} parent=5 // pred_fallthru
        _
      %p320 = scmp.le.s32.totalorder 1, %s24
      %p321 = scmp.lt.s32.totalorder %s24, 3
      %p322 = pnand %p320, %p321
      %p323 = pneg %p322
      // Predicated region
      $region45: #{tpu_custom_call.1} parent=5 // pred_check
        _
      $region46: #{tpu_custom_call.1} parent=5 // pred_check_branch
        %325 = sbr.rel (%p322) target = $region48
      $region47: #{tpu_custom_call.1} parent=5 // pred_region
        %s326 = ssub.s32 %s24, 1
        // Predicated region
        $region49: #{tpu_custom_call.1} parent=47 // pred_check
          %p327 = pneg %p57
        $region50: #{tpu_custom_call.1} parent=47 // pred_check_branch
          %329 = sbr.rel (%p327) target = $region52
        $region51: #{tpu_custom_call.1} parent=47 // pred_region
          %330 = dma.done [#allocation6], 64
        $region52: #{tpu_custom_call.1} parent=47 // pred_fallthru
          _
        // Predicated region
        $region53: #{tpu_custom_call.1} parent=47 // pred_check
          %p331 = pneg %p78
        $region54: #{tpu_custom_call.1} parent=47 // pred_check_branch
          %333 = sbr.rel (%p331) target = $region56
        $region55: #{tpu_custom_call.1} parent=47 // pred_region
          %334 = dma.done [#allocation7], 16
        $region56: #{tpu_custom_call.1} parent=47 // pred_fallthru
          _
        // Predicated region
        $region57: #{tpu_custom_call.1} parent=47 // pred_check
          %p335 = pneg %p99
        $region58: #{tpu_custom_call.1} parent=47 // pred_check_branch
          %337 = sbr.rel (%p335) target = $region60
        $region59: #{tpu_custom_call.1} parent=47 // pred_region
          %338 = dma.done [#allocation10], 64
        $region60: #{tpu_custom_call.1} parent=47 // pred_fallthru
          _
        // Predicated region
        $region61: #{tpu_custom_call.1} parent=47 // pred_check
          %p339 = pneg %p120
        $region62: #{tpu_custom_call.1} parent=47 // pred_check_branch
          %341 = sbr.rel (%p339) target = $region64
        $region63: #{tpu_custom_call.1} parent=47 // pred_region
          %342 = dma.done [#allocation12], 16
        $region64: #{tpu_custom_call.1} parent=47 // pred_fallthru
          _
        %s343 = sand.u32 %s184, 1
        %s344 = scalar_lea.sflag [#allocation4], %s343
        %s345 = sand.u32 %s184, 1
        %s346 = smul.addr %s345, 8
        %s347 = scalar_lea.vmem [#allocation13], %s346
        // Predicated region
        $region65: #{tpu_custom_call.1} parent=47 // pred_check
          %p348 = pneg %p197
        $region66: #{tpu_custom_call.1} parent=47 // pred_check_branch
          %350 = sbr.rel (%p348) target = $region68
        $region67: #{tpu_custom_call.1} parent=47 // pred_region
          %351 = dma.done %s344, 128
        $region68: #{tpu_custom_call.1} parent=47 // pred_fallthru
          _
        %352 = sfence
        %p353 = pneg %p57
        %p354 = pneg %p54
        %p355 = pneg %p78
        %p356 = pneg %p75
        %p357 = pneg %p99
        %p358 = pneg %p96
        %p359 = pneg %p120
        %p360 = pneg %p117
        %p361 = pneg %p141
        %p362 = pneg %p138
        %p363 = scmp.lt.s32.totalorder %s33, 1
        %s364 = scalar_select %p363, %s33, 1
        %p365 = scmp.lt.s32.totalorder %s34, 0
        %s366 = scalar_select %p365, %s34, 0
        %s367 = smul.addr %s364, 4
        %s368 = sadd.s32 %s366, %s367
        %s369 = smul.addr %s368, 2
        %s370 = scalar_lea.vmem %s5, %s369
        %p371 = pneg %p169
        %p372 = pneg %p166
        %s373 = sand.u32 %s184, 1
        %s374 = scalar_lea.sflag [#allocation4], %s373
        %s375 = sand.u32 %s184, 1
        %s376 = smul.addr %s375, 8
        %s377 = scalar_lea.vmem [#allocation13], %s376
        %p378 = pneg %p197
        %p379 = pneg %p194
        %p380 = pneg %p225
        %p381 = pneg %p222
        %s382 = sand.u32 %s212, 1
        %s383 = scalar_lea.sflag [#allocation5], %s382
        %s384 = sand.u32 %s212, 1
        %s385 = smul.addr %s384, 8
        %s386 = scalar_lea.vmem [#allocation14], %s385
        %p387 = scmp.lt.s32.totalorder %s33, 1
        %s388 = scalar_select %p387, %s33, 1
        %p389 = scmp.lt.s32.totalorder %s34, 0
        %s390 = scalar_select %p389, %s34, 0
        %s391 = smul.addr %s388, 4
        %s392 = sadd.s32 %s390, %s391
        %s393 = smul.addr %s392, 2
        %s394 = scalar_lea.vmem %s5, %s393
        %v395 = vld [vmem:[%s394] sm:$0x3]
        %v396 = vld [vmem:[%s394 + $0x2] sm:$0x3]
        %v397 = vld [vmem:[%s394 + $0x4] sm:$0x3]
        %v398 = vld [vmem:[%s394 + $0x6] sm:$0x3]
        %v399 = vld [vmem:[%s347] sm:$0x3]
        %v400 = vld [vmem:[%s347 + $0x2] sm:$0x3]
        %v401 = vld [vmem:[%s347 + $0x4] sm:$0x3]
        %v402 = vld [vmem:[%s347 + $0x6] sm:$0x3]
        %s403 = sld [smem:[#allocation3]]
        %v404 = vstv %s403
        %v405 = vmul.f32 %v395, %v404
        %s406 = sld [smem:[#allocation8]]
        %v407 = vstv %s406
        %v408 = vadd.f32 %v405, %v407
        %s409 = sld [smem:[#allocation3 + $0x80]]
        %v410 = vstv %s409
        %v411 = vmul.f32 %v396, %v410
        %v412 = vadd.f32 %v408, %v411
        %s413 = sld [smem:[#allocation3 + $0x100]]
        %v414 = vstv %s413
        %v415 = vmul.f32 %v397, %v414
        %v416 = vadd.f32 %v412, %v415
        %s417 = sld [smem:[#allocation3 + $0x180]]
        %v418 = vstv %s417
        %v419 = vmul.f32 %v398, %v418
        %v420 = vadd.f32 %v416, %v419
        %s421 = sld [smem:[#allocation9]]
        %v422 = vstv %s421
        %v423 = vmul.f32 %v399, %v422
        %v424 = vadd.f32 %v420, %v423
        %s425 = sld [smem:[#allocation9 + $0x80]]
        %v426 = vstv %s425
        %v427 = vmul.f32 %v400, %v426
        %v428 = vadd.f32 %v424, %v427
        %s429 = sld [smem:[#allocation9 + $0x100]]
        %v430 = vstv %s429
        %v431 = vmul.f32 %v401, %v430
        %v432 = vadd.f32 %v428, %v431
        %s433 = sld [smem:[#allocation9 + $0x180]]
        %v434 = vstv %s433
        %v435 = vmul.f32 %v402, %v434
        %v436 = vadd.f32 %v432, %v435
        %v437 = vmax.f32 %v436, 0.0
        %s438 = sld [smem:[#allocation11]]
        %v439 = vstv %s438
        %v440 = vmul.f32 %v437, %v439
        %s441 = sld [smem:[#allocation3 + $0x1]]
        %v442 = vstv %s441
        %v443 = vmul.f32 %v395, %v442
        %s444 = sld [smem:[#allocation8 + $0x1]]
        %v445 = vstv %s444
        %v446 = vadd.f32 %v443, %v445
        %s447 = sld [smem:[#allocation3 + $0x81]]
        %v448 = vstv %s447
        %v449 = vmul.f32 %v396, %v448
        %v450 = vadd.f32 %v446, %v449
        %s451 = sld [smem:[#allocation3 + $0x101]]
        %v452 = vstv %s451
        %v453 = vmul.f32 %v397, %v452
        %v454 = vadd.f32 %v450, %v453
        %s455 = sld [smem:[#allocation3 + $0x181]]
        %v456 = vstv %s455
        %v457 = vmul.f32 %v398, %v456
        %v458 = vadd.f32 %v454, %v457
        %s459 = sld [smem:[#allocation9 + $0x1]]
        %v460 = vstv %s459
        %v461 = vmul.f32 %v399, %v460
        %v462 = vadd.f32 %v458, %v461
        %s463 = sld [smem:[#allocation9 + $0x81]]
        %v464 = vstv %s463
        %v465 = vmul.f32 %v400, %v464
        %v466 = vadd.f32 %v462, %v465
        %s467 = sld [smem:[#allocation9 + $0x101]]
        %v468 = vstv %s467
        %v469 = vmul.f32 %v401, %v468
        %v470 = vadd.f32 %v466, %v469
        %s471 = sld [smem:[#allocation9 + $0x181]]
        %v472 = vstv %s471
        %v473 = vmul.f32 %v402, %v472
        %v474 = vadd.f32 %v470, %v473
        %v475 = vmax.f32 %v474, 0.0
        %s476 = sld [smem:[#allocation11 + $0x1]]
        %v477 = vstv %s476
        %v478 = vmul.f32 %v475, %v477
        %v479 = vadd.f32 %v440, %v478
        %s480 = sld [smem:[#allocation3 + $0x2]]
        %v481 = vstv %s480
        %v482 = vmul.f32 %v395, %v481
        %s483 = sld [smem:[#allocation8 + $0x2]]
        %v484 = vstv %s483
        %v485 = vadd.f32 %v482, %v484
        %s486 = sld [smem:[#allocation3 + $0x82]]
        %v487 = vstv %s486
        %v488 = vmul.f32 %v396, %v487
        %v489 = vadd.f32 %v485, %v488
        %s490 = sld [smem:[#allocation3 + $0x102]]
        %v491 = vstv %s490
        %v492 = vmul.f32 %v397, %v491
        %v493 = vadd.f32 %v489, %v492
        %s494 = sld [smem:[#allocation3 + $0x182]]
        %v495 = vstv %s494
        %v496 = vmul.f32 %v398, %v495
        %v497 = vadd.f32 %v493, %v496
        %s498 = sld [smem:[#allocation9 + $0x2]]
        %v499 = vstv %s498
        %v500 = vmul.f32 %v399, %v499
        %v501 = vadd.f32 %v497, %v500
        %s502 = sld [smem:[#allocation9 + $0x82]]
        %v503 = vstv %s502
        %v504 = vmul.f32 %v400, %v503
        %v505 = vadd.f32 %v501, %v504
        %s506 = sld [smem:[#allocation9 + $0x102]]
        %v507 = vstv %s506
        %v508 = vmul.f32 %v401, %v507
        %v509 = vadd.f32 %v505, %v508
        %s510 = sld [smem:[#allocation9 + $0x182]]
        %v511 = vstv %s510
        %v512 = vmul.f32 %v402, %v511
        %v513 = vadd.f32 %v509, %v512
        %v514 = vmax.f32 %v513, 0.0
        %s515 = sld [smem:[#allocation11 + $0x2]]
        %v516 = vstv %s515
        %v517 = vmul.f32 %v514, %v516
        %v518 = vadd.f32 %v479, %v517
        %s519 = sld [smem:[#allocation3 + $0x3]]
        %v520 = vstv %s519
        %v521 = vmul.f32 %v395, %v520
        %s522 = sld [smem:[#allocation8 + $0x3]]
        %v523 = vstv %s522
        %v524 = vadd.f32 %v521, %v523
        %s525 = sld [smem:[#allocation3 + $0x83]]
        %v526 = vstv %s525
        %v527 = vmul.f32 %v396, %v526
        %v528 = vadd.f32 %v524, %v527
        %s529 = sld [smem:[#allocation3 + $0x103]]
        %v530 = vstv %s529
        %v531 = vmul.f32 %v397, %v530
        %v532 = vadd.f32 %v528, %v531
        %s533 = sld [smem:[#allocation3 + $0x183]]
        %v534 = vstv %s533
        %v535 = vmul.f32 %v398, %v534
        %v536 = vadd.f32 %v532, %v535
        %s537 = sld [smem:[#allocation9 + $0x3]]
        %v538 = vstv %s537
        %v539 = vmul.f32 %v399, %v538
        %v540 = vadd.f32 %v536, %v539
        %s541 = sld [smem:[#allocation9 + $0x83]]
        %v542 = vstv %s541
        %v543 = vmul.f32 %v400, %v542
        %v544 = vadd.f32 %v540, %v543
        %s545 = sld [smem:[#allocation9 + $0x103]]
        %v546 = vstv %s545
        %v547 = vmul.f32 %v401, %v546
        %v548 = vadd.f32 %v544, %v547
        %s549 = sld [smem:[#allocation9 + $0x183]]
        %v550 = vstv %s549
        %v551 = vmul.f32 %v402, %v550
        %v552 = vadd.f32 %v548, %v551
        %v553 = vmax.f32 %v552, 0.0
        %s554 = sld [smem:[#allocation11 + $0x3]]
        %v555 = vstv %s554
        %v556 = vmul.f32 %v553, %v555
        %v557 = vadd.f32 %v518, %v556
        %s558 = sld [smem:[#allocation3 + $0x4]]
        %v559 = vstv %s558
        %v560 = vmul.f32 %v395, %v559
        %s561 = sld [smem:[#allocation8 + $0x4]]
        %v562 = vstv %s561
        %v563 = vadd.f32 %v560, %v562
        %s564 = sld [smem:[#allocation3 + $0x84]]
        %v565 = vstv %s564
        %v566 = vmul.f32 %v396, %v565
        %v567 = vadd.f32 %v563, %v566
        %s568 = sld [smem:[#allocation3 + $0x104]]
        %v569 = vstv %s568
        %v570 = vmul.f32 %v397, %v569
        %v571 = vadd.f32 %v567, %v570
        %s572 = sld [smem:[#allocation3 + $0x184]]
        %v573 = vstv %s572
        %v574 = vmul.f32 %v398, %v573
        %v575 = vadd.f32 %v571, %v574
        %s576 = sld [smem:[#allocation9 + $0x4]]
        %v577 = vstv %s576
        %v578 = vmul.f32 %v399, %v577
        %v579 = vadd.f32 %v575, %v578
        %s580 = sld [smem:[#allocation9 + $0x84]]
        %v581 = vstv %s580
        %v582 = vmul.f32 %v400, %v581
        %v583 = vadd.f32 %v579, %v582
        %s584 = sld [smem:[#allocation9 + $0x104]]
        %v585 = vstv %s584
        %v586 = vmul.f32 %v401, %v585
        %v587 = vadd.f32 %v583, %v586
        %s588 = sld [smem:[#allocation9 + $0x184]]
        %v589 = vstv %s588
        %v590 = vmul.f32 %v402, %v589
        %v591 = vadd.f32 %v587, %v590
        %v592 = vmax.f32 %v591, 0.0
        %s593 = sld [smem:[#allocation11 + $0x4]]
        %v594 = vstv %s593
        %v595 = vmul.f32 %v592, %v594
        %v596 = vadd.f32 %v557, %v595
        %s597 = sld [smem:[#allocation3 + $0x5]]
        %v598 = vstv %s597
        %v599 = vmul.f32 %v395, %v598
        %s600 = sld [smem:[#allocation8 + $0x5]]
        %v601 = vstv %s600
        %v602 = vadd.f32 %v599, %v601
        %s603 = sld [smem:[#allocation3 + $0x85]]
        %v604 = vstv %s603
        %v605 = vmul.f32 %v396, %v604
        %v606 = vadd.f32 %v602, %v605
        %s607 = sld [smem:[#allocation3 + $0x105]]
        %v608 = vstv %s607
        %v609 = vmul.f32 %v397, %v608
        %v610 = vadd.f32 %v606, %v609
        %s611 = sld [smem:[#allocation3 + $0x185]]
        %v612 = vstv %s611
        %v613 = vmul.f32 %v398, %v612
        %v614 = vadd.f32 %v610, %v613
        %s615 = sld [smem:[#allocation9 + $0x5]]
        %v616 = vstv %s615
        %v617 = vmul.f32 %v399, %v616
        %v618 = vadd.f32 %v614, %v617
        %s619 = sld [smem:[#allocation9 + $0x85]]
        %v620 = vstv %s619
        %v621 = vmul.f32 %v400, %v620
        %v622 = vadd.f32 %v618, %v621
        %s623 = sld [smem:[#allocation9 + $0x105]]
        %v624 = vstv %s623
        %v625 = vmul.f32 %v401, %v624
        %v626 = vadd.f32 %v622, %v625
        %s627 = sld [smem:[#allocation9 + $0x185]]
        %v628 = vstv %s627
        %v629 = vmul.f32 %v402, %v628
        %v630 = vadd.f32 %v626, %v629
        %v631 = vmax.f32 %v630, 0.0
        %s632 = sld [smem:[#allocation11 + $0x5]]
        %v633 = vstv %s632
        %v634 = vmul.f32 %v631, %v633
        %v635 = vadd.f32 %v596, %v634
        %s636 = sld [smem:[#allocation3 + $0x6]]
        %v637 = vstv %s636
        %v638 = vmul.f32 %v395, %v637
        %s639 = sld [smem:[#allocation8 + $0x6]]
        %v640 = vstv %s639
        %v641 = vadd.f32 %v638, %v640
        %s642 = sld [smem:[#allocation3 + $0x86]]
        %v643 = vstv %s642
        %v644 = vmul.f32 %v396, %v643
        %v645 = vadd.f32 %v641, %v644
        %s646 = sld [smem:[#allocation3 + $0x106]]
        %v647 = vstv %s646
        %v648 = vmul.f32 %v397, %v647
        %v649 = vadd.f32 %v645, %v648
        %s650 = sld [smem:[#allocation3 + $0x186]]
        %v651 = vstv %s650
        %v652 = vmul.f32 %v398, %v651
        %v653 = vadd.f32 %v649, %v652
        %s654 = sld [smem:[#allocation9 + $0x6]]
        %v655 = vstv %s654
        %v656 = vmul.f32 %v399, %v655
        %v657 = vadd.f32 %v653, %v656
        %s658 = sld [smem:[#allocation9 + $0x86]]
        %v659 = vstv %s658
        %v660 = vmul.f32 %v400, %v659
        %v661 = vadd.f32 %v657, %v660
        %s662 = sld [smem:[#allocation9 + $0x106]]
        %v663 = vstv %s662
        %v664 = vmul.f32 %v401, %v663
        %v665 = vadd.f32 %v661, %v664
        %s666 = sld [smem:[#allocation9 + $0x186]]
        %v667 = vstv %s666
        %v668 = vmul.f32 %v402, %v667
        %v669 = vadd.f32 %v665, %v668
        %v670 = vmax.f32 %v669, 0.0
        %s671 = sld [smem:[#allocation11 + $0x6]]
        %v672 = vstv %s671
        %v673 = vmul.f32 %v670, %v672
        %v674 = vadd.f32 %v635, %v673
        %s675 = sld [smem:[#allocation3 + $0x7]]
        %v676 = vstv %s675
        %v677 = vmul.f32 %v395, %v676
        %s678 = sld [smem:[#allocation8 + $0x7]]
        %v679 = vstv %s678
        %v680 = vadd.f32 %v677, %v679
        %s681 = sld [smem:[#allocation3 + $0x87]]
        %v682 = vstv %s681
        %v683 = vmul.f32 %v396, %v682
        %v684 = vadd.f32 %v680, %v683
        %s685 = sld [smem:[#allocation3 + $0x107]]
        %v686 = vstv %s685
        %v687 = vmul.f32 %v397, %v686
        %v688 = vadd.f32 %v684, %v687
        %s689 = sld [smem:[#allocation3 + $0x187]]
        %v690 = vstv %s689
        %v691 = vmul.f32 %v398, %v690
        %v692 = vadd.f32 %v688, %v691
        %s693 = sld [smem:[#allocation9 + $0x7]]
        %v694 = vstv %s693
        %v695 = vmul.f32 %v399, %v694
        %v696 = vadd.f32 %v692, %v695
        %s697 = sld [smem:[#allocation9 + $0x87]]
        %v698 = vstv %s697
        %v699 = vmul.f32 %v400, %v698
        %v700 = vadd.f32 %v696, %v699
        %s701 = sld [smem:[#allocation9 + $0x107]]
        %v702 = vstv %s701
        %v703 = vmul.f32 %v401, %v702
        %v704 = vadd.f32 %v700, %v703
        %s705 = sld [smem:[#allocation9 + $0x187]]
        %v706 = vstv %s705
        %v707 = vmul.f32 %v402, %v706
        %v708 = vadd.f32 %v704, %v707
        %v709 = vmax.f32 %v708, 0.0
        %s710 = sld [smem:[#allocation11 + $0x7]]
        %v711 = vstv %s710
        %v712 = vmul.f32 %v709, %v711
        %v713 = vadd.f32 %v674, %v712
        %s714 = sld [smem:[#allocation2]]
        %v715 = vstv %s714
        %v716 = vadd.f32 %v713, %v715
        %v717 = vxor.u32 %v716, 2147483648
        %v718 = vmul.f32 %v717, 1.442695
        %v719 = vpow.pop %v718
        %v720 = vadd.f32 %v719, 1.0
        %v721 = vrcp.pop %v720
        %v722 = vmul.f32 1.0, %v721
        %v723 = vmul.f32 %v399, %v722
        %v724 = vmul.f32 %v400, %v722
        %v725 = vmul.f32 %v401, %v722
        %v726 = vmul.f32 %v402, %v722
        %727 = vst [vmem:[%s386] sm:$0x3] %v723
        %728 = vst [vmem:[%s386 + $0x2] sm:$0x3] %v724
        %729 = vst [vmem:[%s386 + $0x4] sm:$0x3] %v725
        %730 = vst [vmem:[%s386 + $0x6] sm:$0x3] %v726
        %s731 = sand.u32 %s212, 1
        %s732 = scalar_lea.sflag [#allocation5], %s731
        %s733 = sand.u32 %s212, 1
        %s734 = smul.addr %s733, 8
        %s735 = scalar_lea.vmem [#allocation14], %s734
        // Predicated region
        $region69: #{tpu_custom_call.1} parent=47 // pred_check
          %p736 = pneg %p222
        $region70: #{tpu_custom_call.1} parent=47 // pred_check_branch
          %738 = sbr.rel (%p736) target = $region72
        $region71: #{tpu_custom_call.1} parent=47 // pred_region
          %s740 = ssub.s32 128, 128
          %741 = vsyncadd %s732, %s740
          %s742 = smul.addr %s33, 4
          %s743 = sadd.s32 %s34, %s742
          %s744 = smul.addr %s743, 32
          %s745 = scalar_lea.hbm %s7, %s744
          %s746 = sshll.u32 %s735, 4
          %s747 = int_to_ptr.vmem [resolvable:$true] %s746
          %752 = dma.vmem_to_hbm [thread:$0]  %s747, 128, %s745, %s732, 32, 32, 2
        $region72: #{tpu_custom_call.1} parent=47 // pred_fallthru
          _
      $region48: #{tpu_custom_call.1} parent=5 // pred_fallthru
        _
      %p753 = scmp.le.s32.totalorder 2, %s24
      // Predicated region
      $region73: #{tpu_custom_call.1} parent=5 // pred_check
        %p754 = pneg %p753
      $region74: #{tpu_custom_call.1} parent=5 // pred_check_branch
        %756 = sbr.rel (%p754) target = $region76
      $region75: #{tpu_custom_call.1} parent=5 // pred_region
        %s757 = ssub.s32 %s24, 2
        // Predicated region
        $region77: #{tpu_custom_call.1} parent=75 // pred_check
          %p758 = pneg %p228
        $region78: #{tpu_custom_call.1} parent=75 // pred_check_branch
          %760 = sbr.rel (%p758) target = $region80
        $region79: #{tpu_custom_call.1} parent=75 // pred_region
          %s761 = sand.u32 %s213, 1
          %s762 = scalar_lea.sflag [#allocation5], %s761
          %s763 = sand.u32 %s213, 1
          %s764 = smul.addr %s763, 8
          %s765 = scalar_lea.vmem [#allocation14], %s764
          %766 = dma.done %s762, 128
        $region80: #{tpu_custom_call.1} parent=75 // pred_fallthru
          _
      $region76: #{tpu_custom_call.1} parent=5 // pred_fallthru
        _
    $region6: #{tpu_custom_call.1} parent=1 // loop_footer
      %s28 = sadd.s32 1, %s24
    $region7: #{tpu_custom_call.1} parent=1 // loop_footer_branch
      %23 = sbr.rel target = $region3
    $region8: #{tpu_custom_call.1} parent=1 // loop_exit
      _
    %767 = vsyncpa [#allocation4], 1
    %s768 = scalar_lea.sflag [#allocation4], 1
    %769 = vsyncpa %s768, 1
    %770 = vsyncpa [#allocation5], 1
    %s771 = scalar_lea.sflag [#allocation5], 1
    %772 = vsyncpa %s771, 1
    %773 = vsyncpa [#allocation6], 1
    %s774 = scalar_lea.sflag [#allocation6], 1
    %775 = vsyncpa %s774, 1
    %776 = vsyncpa [#allocation10], 1
    %777 = vsyncpa [#allocation7], 1
    %s778 = scalar_lea.sflag [#allocation7], 1
    %779 = vsyncpa %s778, 1
    %780 = vsyncpa [#allocation12], 1

</llo_original>
